<compile_context>
chip_gen: v7x
topology: tpu7x:2x2x1
jax: 0.10.0
libtpu: 0.0.40
codegen_flags: <defaults>
</compile_context>

<pallas_src>
import functools

import jax
import jax.numpy as jnp
from jax import lax
from jax.experimental import pallas as pl
from jax.experimental.pallas import tpu as pltpu

NEG_SLOPE = 0.2
BN_EPS = 1e-5

# f32 GEMM keeps the strict comparison against the f32 lax.conv reference tight
# on every TPU generation (v5e has no bf16 VPU either). The problem is tiny and
# launch-overhead bound, so bf16 MXU feeding buys nothing here.
GEMM_DTYPE = jnp.float32


def _round_up(x, n):
    return ((x + n - 1) // n) * n


# ---------------------------------------------------------------------------
# Fused Pallas kernel:  GEMM (lane-dense output) + {bias | BatchNorm} + LeakyReLU
# ---------------------------------------------------------------------------
def _conv_fused_kernel(p_ref, w_ref, a_ref, b_ref, o_ref, *, mode, m_valid):
    # p_ref: [Kp, TM]   (K on sublanes, M on lanes -> lane-dense everywhere)
    # w_ref: [Coutp, Kp]
    # a_ref: [Coutp, 1]  gamma (BN) / unused (bias modes)
    # b_ref: [Coutp, 1]  beta (BN) / bias
    # o_ref: [Coutp, TM]
    y = jnp.dot(w_ref[...], p_ref[...], preferred_element_type=jnp.float32)

    if mode == "bn_lrelu":
        # Batch-norm statistics over the valid M columns only (padded patch
        # columns are zero; mask them out of mean/var exactly like PyTorch).
        col = lax.broadcasted_iota(jnp.int32, y.shape, 1)
        valid = col < m_valid
        inv_m = jnp.float32(1.0 / m_valid)
        yv = jnp.where(valid, y, 0.0)
        mean = jnp.sum(yv, axis=1, keepdims=True) * inv_m
        d = jnp.where(valid, y - mean, 0.0)
        var = jnp.sum(d * d, axis=1, keepdims=True) * inv_m        # biased var
        scale = a_ref[...] * lax.rsqrt(var + BN_EPS)
        shift = b_ref[...] - mean * scale
        y = y * scale + shift
        y = jnp.where(y >= 0, y, NEG_SLOPE * y)
    else:
        y = y + b_ref[...]
        if mode == "bias_lrelu":
            y = jnp.where(y >= 0, y, NEG_SLOPE * y)

    o_ref[...] = y


def conv_gemm_fused(p, w2, a, b, *, mode, m_valid, m_tile=None):
    """P:[Kp,Mp], W:[Coutp,Kp] -> fused conv layer output [Coutp, Mp] (f32)."""
    kp, mp = p.shape
    coutp = w2.shape[0]
    tm = mp if m_tile is None else min(m_tile, mp)
    assert mp % tm == 0
    if mode == "bn_lrelu":
        # BN needs global batch statistics -> single full-extent M block.
        assert tm == mp
    grid = (mp // tm,)
    sem = "arbitrary" if mode == "bn_lrelu" else "parallel"

    return pl.pallas_call(
        functools.partial(_conv_fused_kernel, mode=mode, m_valid=int(m_valid)),
        out_shape=jax.ShapeDtypeStruct((coutp, mp), jnp.float32),
        grid=grid,
        in_specs=[
            pl.BlockSpec((kp, tm), lambda i: (0, i)),        # patches tile
            pl.BlockSpec((coutp, kp), lambda i: (0, 0)),     # weights (resident)
            pl.BlockSpec((coutp, 1), lambda i: (0, 0)),      # gamma / unused
            pl.BlockSpec((coutp, 1), lambda i: (0, 0)),      # beta / bias
        ],
        out_specs=pl.BlockSpec((coutp, tm), lambda i: (0, i)),
        compiler_params=pltpu.CompilerParams(
            dimension_semantics=(sem,),
            vmem_limit_bytes=32 * 1024 * 1024,   # explicit budget, v7x-safe
        ),
    )(p, w2, a, b)


# ---------------------------------------------------------------------------
# Conv layer = im2col (XLA glue, [K, M] layout) + fused Pallas kernel
# ---------------------------------------------------------------------------
def conv_layer(x_cf, w_pt, stride, *, bias=None, bn=None, leaky=True, m_tile=None):
    """x_cf is channels-first [Cin, N, H, W]; w_pt is PyTorch OIHW weight.
    Returns channels-first [Cout, N, OH, OW]."""
    cout, cin, kh, kw = w_pt.shape
    _, n, h, wdim = x_cf.shape
    pad = 1
    oh = (h + 2 * pad - kh) // stride + 1
    ow = (wdim + 2 * pad - kw) // stride + 1
    m = n * oh * ow
    k = kh * kw * cin

    # --- im2col directly in [K, M] (K-major) layout; XLA fuses pad+slice+stack.
    # TODO(synk): fold the patch extraction into the pallas_call (kh*kw
    # partial-GEMM grid axis) to kill the 16x duplication; negligible at
    # these activation sizes.
    xp = jnp.pad(x_cf, ((0, 0), (0, 0), (pad, pad), (pad, pad)))
    cols = []
    for i in range(kh):
        for j in range(kw):
            cols.append(lax.slice(
                xp,
                (0, 0, i, j),
                (cin, n, i + stride * (oh - 1) + 1, j + stride * (ow - 1) + 1),
                (1, 1, stride, stride)))
    p = jnp.stack(cols, axis=0).reshape(k, m)          # K order = (i, j, cin)

    # --- pad to aligned GEMM shapes (zero padding is exact: contributes 0).
    kp = _round_up(k, 128)
    mp = _round_up(m, 128)
    coutp = _round_up(cout, 8)
    p = jnp.pad(p, ((0, kp - k), (0, mp - m))).astype(GEMM_DTYPE)

    # weight -> [Coutp, Kp] with K order matching the patches: (i, j, cin)
    w2 = jnp.transpose(w_pt, (0, 2, 3, 1)).reshape(cout, k)
    w2 = jnp.pad(w2, ((0, coutp - cout), (0, kp - k))).astype(GEMM_DTYPE)

    if bn is not None:
        gamma, beta = bn
        a = jnp.pad(gamma.astype(jnp.float32), (0, coutp - cout)).reshape(coutp, 1)
        b = jnp.pad(beta.astype(jnp.float32), (0, coutp - cout)).reshape(coutp, 1)
        mode = "bn_lrelu"
    else:
        bvec = bias if bias is not None else jnp.zeros((cout,), jnp.float32)
        a = jnp.ones((coutp, 1), jnp.float32)          # unused in bias modes
        b = jnp.pad(bvec.astype(jnp.float32), (0, coutp - cout)).reshape(coutp, 1)
        mode = "bias_lrelu" if leaky else "bias"

    y = conv_gemm_fused(p, w2, a, b, mode=mode, m_valid=m, m_tile=m_tile)
    return y[:cout, :m].reshape(cout, n, oh, ow)


def nlayer_discriminator_forward(x_nchw, params):
    """Full PatchGAN forward. Input/output NCHW (PyTorch convention)."""
    x = jnp.transpose(x_nchw, (1, 0, 2, 3)).astype(jnp.float32)   # -> [C, N, H, W]
    # layer 0: 2 parallel M-tiles of 256 (feeds both v7x TensorCores)
    x = conv_layer(x, params["w0"], 2, bias=params["b0"], leaky=True, m_tile=256)
    x = conv_layer(x, params["w1"], 2, bn=(params["g1"], params["be1"]))
    x = conv_layer(x, params["w2"], 2, bn=(params["g2"], params["be2"]))
    x = conv_layer(x, params["w3"], 1, bn=(params["g3"], params["be3"]))
    x = conv_layer(x, params["w4"], 1, bias=params["b4"], leaky=False)
    return jnp.transpose(x, (1, 0, 2, 3))                         # -> NCHW


# ---------------------------------------------------------------------------
# Pure-JAX reference (lax.conv) for correctness check
# ---------------------------------------------------------------------------
def _ref_conv(x, w, stride):
    return lax.conv_general_dilated(
        x, w, window_strides=(stride, stride), padding=[(1, 1), (1, 1)],
        dimension_numbers=("NCHW", "OIHW", "NCHW"),
        precision=lax.Precision.HIGHEST)


def reference_forward(x, params):
    lrelu = lambda v: jnp.where(v >= 0, v, NEG_SLOPE * v)

    def bn(v, gamma, beta):
        mean = jnp.mean(v, axis=(0, 2, 3), keepdims=True)
        var = jnp.mean((v - mean) ** 2, axis=(0, 2, 3), keepdims=True)
        vhat = (v - mean) / jnp.sqrt(var + BN_EPS)
        return vhat * gamma[None, :, None, None] + beta[None, :, None, None]

    y = lrelu(_ref_conv(x, params["w0"], 2) + params["b0"][None, :, None, None])
    y = lrelu(bn(_ref_conv(y, params["w1"], 2), params["g1"], params["be1"]))
    y = lrelu(bn(_ref_conv(y, params["w2"], 2), params["g2"], params["be2"]))
    y = lrelu(bn(_ref_conv(y, params["w3"], 1), params["g3"], params["be3"]))
    y = _ref_conv(y, params["w4"], 1) + params["b4"][None, :, None, None]
    return y


# ---------------------------------------------------------------------------
def make_params(key, input_nc=3, ndf=8):
    ks = jax.random.split(key, 16)
    p = {}
    p["w0"] = 0.05 * jax.random.normal(ks[0], (ndf, input_nc, 4, 4), jnp.float32)
    p["b0"] = 0.02 * jax.random.normal(ks[1], (ndf,), jnp.float32)
    p["w1"] = 0.05 * jax.random.normal(ks[2], (ndf * 2, ndf, 4, 4), jnp.float32)
    p["g1"] = 1.0 + 0.1 * jax.random.normal(ks[3], (ndf * 2,), jnp.float32)
    p["be1"] = 0.05 * jax.random.normal(ks[4], (ndf * 2,), jnp.float32)
    p["w2"] = 0.05 * jax.random.normal(ks[5], (ndf * 4, ndf * 2, 4, 4), jnp.float32)
    p["g2"] = 1.0 + 0.1 * jax.random.normal(ks[6], (ndf * 4,), jnp.float32)
    p["be2"] = 0.05 * jax.random.normal(ks[7], (ndf * 4,), jnp.float32)
    p["w3"] = 0.05 * jax.random.normal(ks[8], (ndf * 8, ndf * 4, 4, 4), jnp.float32)
    p["g3"] = 1.0 + 0.1 * jax.random.normal(ks[9], (ndf * 8,), jnp.float32)
    p["be3"] = 0.05 * jax.random.normal(ks[10], (ndf * 8,), jnp.float32)
    p["w4"] = 0.05 * jax.random.normal(ks[11], (1, ndf * 8, 4, 4), jnp.float32)
    p["b4"] = 0.02 * jax.random.normal(ks[12], (1,), jnp.float32)
    return p


if __name__ == "__main__":
    key = jax.random.PRNGKey(0)
    k_x, k_p = jax.random.split(key)

    # batch=2, input_nc=3, spatial=32 (small, but large enough that the final
    # 4x4 stride-1 convs still produce a valid patch map: 32->16->8->4->3->2)
    x = jax.random.normal(k_x, (2, 3, 32, 32), jnp.float32)
    params = make_params(k_p, input_nc=3, ndf=8)

    out = jax.jit(nlayer_discriminator_forward)(x, params)
    out = jax.block_until_ready(out)
    assert out.shape == (2, 1, 2, 2), out.shape

    ref = jax.block_until_ready(reference_forward(x, params))
    assert jnp.allclose(out, ref, rtol=2e-2, atol=2e-2), (
        float(jnp.max(jnp.abs(out - ref))))

    print("KERNEL_OK")
</pallas_src>

<mosaic_0001>
module attributes {stable_mosaic.version = 11 : i64} {
  func.func @_conv_fused_kernel(%arg0: i32, %arg1: memref<128x256xf32, #tpu.memory_space<vmem>>, %arg2: memref<8x128xf32, #tpu.memory_space<vmem>>, %arg3: memref<8x1xf32, #tpu.memory_space<vmem>>, %arg4: memref<8x1xf32, #tpu.memory_space<vmem>>, %arg5: memref<8x256xf32, #tpu.memory_space<vmem>>) attributes {dimension_semantics = [#tpu.dimension_semantics<parallel>], iteration_bounds = array<i64: 2>, scalar_prefetch = 0 : i64, scratch_operands = 0 : i64, tpu.core_type = #tpu.core_type<tc>, window_params = [{transform_indices = @transform_0, window_bounds = array<i64: 128, 256>}, {pipeline_mode = #tpu.pipeline_mode<synchronous>, transform_indices = @transform_1, window_bounds = array<i64: 8, 128>}, {pipeline_mode = #tpu.pipeline_mode<synchronous>, transform_indices = @transform_2, window_bounds = array<i64: 8, 1>}, {pipeline_mode = #tpu.pipeline_mode<synchronous>, transform_indices = @transform_3, window_bounds = array<i64: 8, 1>}, {transform_indices = @transform_4, window_bounds = array<i64: 8, 256>}]} {
    %c0 = arith.constant 0 : index
    %c0_0 = arith.constant 0 : index
    %0 = vector.load %arg2[%c0, %c0_0] : memref<8x128xf32, #tpu.memory_space<vmem>>, vector<8x128xf32>
    %c0_1 = arith.constant 0 : index
    %c0_2 = arith.constant 0 : index
    %1 = vector.load %arg1[%c0_1, %c0_2] : memref<128x256xf32, #tpu.memory_space<vmem>>, vector<128x256xf32>
    %cst = arith.constant dense<0.000000e+00> : vector<8x256xf32>
    %2 = tpu.matmul %0, %1, %cst {dimension_numbers = #tpu.dot_dimension_numbers<[1], [0], [0], [1], [0, 0, 1, 1], [], []>} : vector<8x128xf32>, vector<128x256xf32>, vector<8x256xf32> -> vector<8x256xf32>
    %c0_3 = arith.constant 0 : index
    %c0_4 = arith.constant 0 : index
    %3 = vector.load %arg4[%c0_3, %c0_4] : memref<8x1xf32, #tpu.memory_space<vmem>>, vector<8x1xf32>
    %4 = vector.broadcast %3 : vector<8x1xf32> to vector<8x256xf32>
    %5 = arith.addf %2, %4 : vector<8x256xf32>
    %cst_5 = arith.constant 0.000000e+00 : f32
    %6 = vector.broadcast %cst_5 : f32 to vector<8x256xf32>
    %7 = arith.cmpf oge, %5, %6 : vector<8x256xf32>
    %cst_6 = arith.constant 2.000000e-01 : f32
    %8 = vector.broadcast %cst_6 : f32 to vector<8x256xf32>
    %9 = arith.mulf %8, %5 : vector<8x256xf32>
    %10 = arith.select %7, %5, %9 : vector<8x256xi1>, vector<8x256xf32>
    %c0_7 = arith.constant 0 : index
    %c0_8 = arith.constant 0 : index
    %11 = vector.load %arg5[%c0_7, %c0_8] : memref<8x256xf32, #tpu.memory_space<vmem>>, vector<8x256xf32>
    tpu.vector_store %arg5[%c0_7, %c0_8], %10 {strides = array<i32>} : memref<8x256xf32, #tpu.memory_space<vmem>>, vector<8x256xf32>,
    return
  }
  func.func @transform_0(%arg0: i32) -> (i32, i32) {
    %c0_i32 = arith.constant 0 : i32
    %c0_i32_0 = arith.constant 0 : i32
    return %c0_i32, %arg0 : i32, i32
  }
  func.func @transform_1(%arg0: i32) -> (i32, i32) {
    %c0_i32 = arith.constant 0 : i32
    %c0_i32_0 = arith.constant 0 : i32
    %c0_i32_1 = arith.constant 0 : i32
    return %c0_i32, %c0_i32_0 : i32, i32
  }
  func.func @transform_2(%arg0: i32) -> (i32, i32) {
    %c0_i32 = arith.constant 0 : i32
    %c0_i32_0 = arith.constant 0 : i32
    %c0_i32_1 = arith.constant 0 : i32
    return %c0_i32, %c0_i32_0 : i32, i32
  }
  func.func @transform_3(%arg0: i32) -> (i32, i32) {
    %c0_i32 = arith.constant 0 : i32
    %c0_i32_0 = arith.constant 0 : i32
    %c0_i32_1 = arith.constant 0 : i32
    return %c0_i32, %c0_i32_0 : i32, i32
  }
  func.func @transform_4(%arg0: i32) -> (i32, i32) {
    %c0_i32 = arith.constant 0 : i32
    %c0_i32_0 = arith.constant 0 : i32
    return %c0_i32, %arg0 : i32, i32
  }
}

module attributes {stable_mosaic.version = 11 : i64} {
  func.func @_conv_fused_kernel(%arg0: i32, %arg1: memref<128x128xf32, #tpu.memory_space<vmem>>, %arg2: memref<16x128xf32, #tpu.memory_space<vmem>>, %arg3: memref<16x1xf32, #tpu.memory_space<vmem>>, %arg4: memref<16x1xf32, #tpu.memory_space<vmem>>, %arg5: memref<16x128xf32, #tpu.memory_space<vmem>>) attributes {dimension_semantics = [#tpu.dimension_semantics<arbitrary>], iteration_bounds = array<i64: 1>, scalar_prefetch = 0 : i64, scratch_operands = 0 : i64, tpu.core_type = #tpu.core_type<tc>, window_params = [{transform_indices = @transform_0, window_bounds = array<i64: 128, 128>}, {pipeline_mode = #tpu.pipeline_mode<synchronous>, transform_indices = @transform_1, window_bounds = array<i64: 16, 128>}, {pipeline_mode = #tpu.pipeline_mode<synchronous>, transform_indices = @transform_2, window_bounds = array<i64: 16, 1>}, {pipeline_mode = #tpu.pipeline_mode<synchronous>, transform_indices = @transform_3, window_bounds = array<i64: 16, 1>}, {transform_indices = @transform_4, window_bounds = array<i64: 16, 128>}]} {
    %c0 = arith.constant 0 : index
    %c0_0 = arith.constant 0 : index
    %0 = vector.load %arg2[%c0, %c0_0] : memref<16x128xf32, #tpu.memory_space<vmem>>, vector<16x128xf32>
    %c0_1 = arith.constant 0 : index
    %c0_2 = arith.constant 0 : index
    %1 = vector.load %arg1[%c0_1, %c0_2] : memref<128x128xf32, #tpu.memory_space<vmem>>, vector<128x128xf32>
    %cst = arith.constant dense<0.000000e+00> : vector<16x128xf32>
    %2 = tpu.matmul %0, %1, %cst {dimension_numbers = #tpu.dot_dimension_numbers<[1], [0], [0], [1], [0, 0, 1, 1], [], []>} : vector<16x128xf32>, vector<128x128xf32>, vector<16x128xf32> -> vector<16x128xf32>
    %3 = tpu.iota {dimensions = array<i32: 1>} : vector<16x128xi32>
    %c128_i32 = arith.constant 128 : i32
    %4 = vector.broadcast %c128_i32 : i32 to vector<16x128xi32>
    %5 = arith.cmpi slt, %3, %4 : vector<16x128xi32>
    %cst_3 = arith.constant 0.000000e+00 : f32
    %6 = vector.broadcast %cst_3 : f32 to vector<16x128xf32>
    %7 = arith.select %5, %2, %6 : vector<16x128xi1>, vector<16x128xf32>
    %cst_4 = arith.constant dense<0.000000e+00> : vector<16xf32>
    %8 = vector.multi_reduction <add>, %7, %cst_4 [1] : vector<16x128xf32> to vector<16xf32>
    %9 = vector.shape_cast %8 : vector<16xf32> to vector<16x1xf32>
    %cst_5 = arith.constant 7.812500e-03 : f32
    %10 = vector.broadcast %cst_5 : f32 to vector<16x1xf32>
    %11 = arith.mulf %9, %10 : vector<16x1xf32>
    %12 = vector.broadcast %11 : vector<16x1xf32> to vector<16x128xf32>
    %13 = arith.subf %2, %12 : vector<16x128xf32>
    %cst_6 = arith.constant 0.000000e+00 : f32
    %14 = vector.broadcast %cst_6 : f32 to vector<16x128xf32>
    %15 = arith.select %5, %13, %14 : vector<16x128xi1>, vector<16x128xf32>
    %16 = arith.mulf %15, %15 : vector<16x128xf32>
    %cst_7 = arith.constant dense<0.000000e+00> : vector<16xf32>
    %17 = vector.multi_reduction <add>, %16, %cst_7 [1] : vector<16x128xf32> to vector<16xf32>
    %18 = vector.shape_cast %17 : vector<16xf32> to vector<16x1xf32>
    %cst_8 = arith.constant 7.812500e-03 : f32
    %19 = vector.broadcast %cst_8 : f32 to vector<16x1xf32>
    %20 = arith.mulf %18, %19 : vector<16x1xf32>
    %c0_9 = arith.constant 0 : index
    %c0_10 = arith.constant 0 : index
    %21 = vector.load %arg3[%c0_9, %c0_10] : memref<16x1xf32, #tpu.memory_space<vmem>>, vector<16x1xf32>
    %cst_11 = arith.constant 9.99999974E-6 : f32
    %22 = vector.broadcast %cst_11 : f32 to vector<16x1xf32>
    %23 = arith.addf %20, %22 : vector<16x1xf32>
    %24 = math.rsqrt %23 : vector<16x1xf32>
    %25 = arith.mulf %21, %24 : vector<16x1xf32>
    %c0_12 = arith.constant 0 : index
    %c0_13 = arith.constant 0 : index
    %26 = vector.load %arg4[%c0_12, %c0_13] : memref<16x1xf32, #tpu.memory_space<vmem>>, vector<16x1xf32>
    %27 = arith.mulf %11, %25 : vector<16x1xf32>
    %28 = arith.subf %26, %27 : vector<16x1xf32>
    %29 = vector.broadcast %25 : vector<16x1xf32> to vector<16x128xf32>
    %30 = arith.mulf %2, %29 : vector<16x128xf32>
    %31 = vector.broadcast %28 : vector<16x1xf32> to vector<16x128xf32>
    %32 = arith.addf %30, %31 : vector<16x128xf32>
    %cst_14 = arith.constant 0.000000e+00 : f32
    %33 = vector.broadcast %cst_14 : f32 to vector<16x128xf32>
    %34 = arith.cmpf oge, %32, %33 : vector<16x128xf32>
    %cst_15 = arith.constant 2.000000e-01 : f32
    %35 = vector.broadcast %cst_15 : f32 to vector<16x128xf32>
    %36 = arith.mulf %35, %32 : vector<16x128xf32>
    %37 = arith.select %34, %32, %36 : vector<16x128xi1>, vector<16x128xf32>
    %c0_16 = arith.constant 0 : index
    %c0_17 = arith.constant 0 : index
    %38 = vector.load %arg5[%c0_16, %c0_17] : memref<16x128xf32, #tpu.memory_space<vmem>>, vector<16x128xf32>
    tpu.vector_store %arg5[%c0_16, %c0_17], %37 {strides = array<i32>} : memref<16x128xf32, #tpu.memory_space<vmem>>, vector<16x128xf32>,
    return
  }
  func.func @transform_0(%arg0: i32) -> (i32, i32) {
    %c0_i32 = arith.constant 0 : i32
    %c0_i32_0 = arith.constant 0 : i32
    return %c0_i32, %arg0 : i32, i32
  }
  func.func @transform_1(%arg0: i32) -> (i32, i32) {
    %c0_i32 = arith.constant 0 : i32
    %c0_i32_0 = arith.constant 0 : i32
    %c0_i32_1 = arith.constant 0 : i32
    return %c0_i32, %c0_i32_0 : i32, i32
  }
  func.func @transform_2(%arg0: i32) -> (i32, i32) {
    %c0_i32 = arith.constant 0 : i32
    %c0_i32_0 = arith.constant 0 : i32
    %c0_i32_1 = arith.constant 0 : i32
    return %c0_i32, %c0_i32_0 : i32, i32
  }
  func.func @transform_3(%arg0: i32) -> (i32, i32) {
    %c0_i32 = arith.constant 0 : i32
    %c0_i32_0 = arith.constant 0 : i32
    %c0_i32_1 = arith.constant 0 : i32
    return %c0_i32, %c0_i32_0 : i32, i32
  }
  func.func @transform_4(%arg0: i32) -> (i32, i32) {
    %c0_i32 = arith.constant 0 : i32
    %c0_i32_0 = arith.constant 0 : i32
    return %c0_i32, %arg0 : i32, i32
  }
}

module attributes {stable_mosaic.version = 11 : i64} {
  func.func @_conv_fused_kernel(%arg0: i32, %arg1: memref<256x128xf32, #tpu.memory_space<vmem>>, %arg2: memref<32x256xf32, #tpu.memory_space<vmem>>, %arg3: memref<32x1xf32, #tpu.memory_space<vmem>>, %arg4: memref<32x1xf32, #tpu.memory_space<vmem>>, %arg5: memref<32x128xf32, #tpu.memory_space<vmem>>) attributes {dimension_semantics = [#tpu.dimension_semantics<arbitrary>], iteration_bounds = array<i64: 1>, scalar_prefetch = 0 : i64, scratch_operands = 0 : i64, tpu.core_type = #tpu.core_type<tc>, window_params = [{transform_indices = @transform_0, window_bounds = array<i64: 256, 128>}, {pipeline_mode = #tpu.pipeline_mode<synchronous>, transform_indices = @transform_1, window_bounds = array<i64: 32, 256>}, {pipeline_mode = #tpu.pipeline_mode<synchronous>, transform_indices = @transform_2, window_bounds = array<i64: 32, 1>}, {pipeline_mode = #tpu.pipeline_mode<synchronous>, transform_indices = @transform_3, window_bounds = array<i64: 32, 1>}, {transform_indices = @transform_4, window_bounds = array<i64: 32, 128>}]} {
    %c0 = arith.constant 0 : index
    %c0_0 = arith.constant 0 : index
    %0 = vector.load %arg2[%c0, %c0_0] : memref<32x256xf32, #tpu.memory_space<vmem>>, vector<32x256xf32>
    %c0_1 = arith.constant 0 : index
    %c0_2 = arith.constant 0 : index
    %1 = vector.load %arg1[%c0_1, %c0_2] : memref<256x128xf32, #tpu.memory_space<vmem>>, vector<256x128xf32>
    %cst = arith.constant dense<0.000000e+00> : vector<32x128xf32>
    %2 = tpu.matmul %0, %1, %cst {dimension_numbers = #tpu.dot_dimension_numbers<[1], [0], [0], [1], [0, 0, 1, 1], [], []>} : vector<32x256xf32>, vector<256x128xf32>, vector<32x128xf32> -> vector<32x128xf32>
    %3 = tpu.iota {dimensions = array<i32: 1>} : vector<32x128xi32>
    %c32_i32 = arith.constant 32 : i32
    %4 = vector.broadcast %c32_i32 : i32 to vector<32x128xi32>
    %5 = arith.cmpi slt, %3, %4 : vector<32x128xi32>
    %cst_3 = arith.constant 0.000000e+00 : f32
    %6 = vector.broadcast %cst_3 : f32 to vector<32x128xf32>
    %7 = arith.select %5, %2, %6 : vector<32x128xi1>, vector<32x128xf32>
    %cst_4 = arith.constant dense<0.000000e+00> : vector<32xf32>
    %8 = vector.multi_reduction <add>, %7, %cst_4 [1] : vector<32x128xf32> to vector<32xf32>
    %9 = vector.shape_cast %8 : vector<32xf32> to vector<32x1xf32>
    %cst_5 = arith.constant 3.125000e-02 : f32
    %10 = vector.broadcast %cst_5 : f32 to vector<32x1xf32>
    %11 = arith.mulf %9, %10 : vector<32x1xf32>
    %12 = vector.broadcast %11 : vector<32x1xf32> to vector<32x128xf32>
    %13 = arith.subf %2, %12 : vector<32x128xf32>
    %cst_6 = arith.constant 0.000000e+00 : f32
    %14 = vector.broadcast %cst_6 : f32 to vector<32x128xf32>
    %15 = arith.select %5, %13, %14 : vector<32x128xi1>, vector<32x128xf32>
    %16 = arith.mulf %15, %15 : vector<32x128xf32>
    %cst_7 = arith.constant dense<0.000000e+00> : vector<32xf32>
    %17 = vector.multi_reduction <add>, %16, %cst_7 [1] : vector<32x128xf32> to vector<32xf32>
    %18 = vector.shape_cast %17 : vector<32xf32> to vector<32x1xf32>
    %cst_8 = arith.constant 3.125000e-02 : f32
    %19 = vector.broadcast %cst_8 : f32 to vector<32x1xf32>
    %20 = arith.mulf %18, %19 : vector<32x1xf32>
    %c0_9 = arith.constant 0 : index
    %c0_10 = arith.constant 0 : index
    %21 = vector.load %arg3[%c0_9, %c0_10] : memref<32x1xf32, #tpu.memory_space<vmem>>, vector<32x1xf32>
    %cst_11 = arith.constant 9.99999974E-6 : f32
    %22 = vector.broadcast %cst_11 : f32 to vector<32x1xf32>
    %23 = arith.addf %20, %22 : vector<32x1xf32>
    %24 = math.rsqrt %23 : vector<32x1xf32>
    %25 = arith.mulf %21, %24 : vector<32x1xf32>
    %c0_12 = arith.constant 0 : index
    %c0_13 = arith.constant 0 : index
    %26 = vector.load %arg4[%c0_12, %c0_13] : memref<32x1xf32, #tpu.memory_space<vmem>>, vector<32x1xf32>
    %27 = arith.mulf %11, %25 : vector<32x1xf32>
    %28 = arith.subf %26, %27 : vector<32x1xf32>
    %29 = vector.broadcast %25 : vector<32x1xf32> to vector<32x128xf32>
    %30 = arith.mulf %2, %29 : vector<32x128xf32>
    %31 = vector.broadcast %28 : vector<32x1xf32> to vector<32x128xf32>
    %32 = arith.addf %30, %31 : vector<32x128xf32>
    %cst_14 = arith.constant 0.000000e+00 : f32
    %33 = vector.broadcast %cst_14 : f32 to vector<32x128xf32>
    %34 = arith.cmpf oge, %32, %33 : vector<32x128xf32>
    %cst_15 = arith.constant 2.000000e-01 : f32
    %35 = vector.broadcast %cst_15 : f32 to vector<32x128xf32>
    %36 = arith.mulf %35, %32 : vector<32x128xf32>
    %37 = arith.select %34, %32, %36 : vector<32x128xi1>, vector<32x128xf32>
    %c0_16 = arith.constant 0 : index
    %c0_17 = arith.constant 0 : index
    %38 = vector.load %arg5[%c0_16, %c0_17] : memref<32x128xf32, #tpu.memory_space<vmem>>, vector<32x128xf32>
    tpu.vector_store %arg5[%c0_16, %c0_17], %37 {strides = array<i32>} : memref<32x128xf32, #tpu.memory_space<vmem>>, vector<32x128xf32>,
    return
  }
  func.func @transform_0(%arg0: i32) -> (i32, i32) {
    %c0_i32 = arith.constant 0 : i32
    %c0_i32_0 = arith.constant 0 : i32
    return %c0_i32, %arg0 : i32, i32
  }
  func.func @transform_1(%arg0: i32) -> (i32, i32) {
    %c0_i32 = arith.constant 0 : i32
    %c0_i32_0 = arith.constant 0 : i32
    %c0_i32_1 = arith.constant 0 : i32
    return %c0_i32, %c0_i32_0 : i32, i32
  }
  func.func @transform_2(%arg0: i32) -> (i32, i32) {
    %c0_i32 = arith.constant 0 : i32
    %c0_i32_0 = arith.constant 0 : i32
    %c0_i32_1 = arith.constant 0 : i32
    return %c0_i32, %c0_i32_0 : i32, i32
  }
  func.func @transform_3(%arg0: i32) -> (i32, i32) {
    %c0_i32 = arith.constant 0 : i32
    %c0_i32_0 = arith.constant 0 : i32
    %c0_i32_1 = arith.constant 0 : i32
    return %c0_i32, %c0_i32_0 : i32, i32
  }
  func.func @transform_4(%arg0: i32) -> (i32, i32) {
    %c0_i32 = arith.constant 0 : i32
    %c0_i32_0 = arith.constant 0 : i32
    return %c0_i32, %arg0 : i32, i32
  }
}

module attributes {stable_mosaic.version = 11 : i64} {
  func.func @_conv_fused_kernel(%arg0: i32, %arg1: memref<512x128xf32, #tpu.memory_space<vmem>>, %arg2: memref<64x512xf32, #tpu.memory_space<vmem>>, %arg3: memref<64x1xf32, #tpu.memory_space<vmem>>, %arg4: memref<64x1xf32, #tpu.memory_space<vmem>>, %arg5: memref<64x128xf32, #tpu.memory_space<vmem>>) attributes {dimension_semantics = [#tpu.dimension_semantics<arbitrary>], iteration_bounds = array<i64: 1>, scalar_prefetch = 0 : i64, scratch_operands = 0 : i64, tpu.core_type = #tpu.core_type<tc>, window_params = [{transform_indices = @transform_0, window_bounds = array<i64: 512, 128>}, {pipeline_mode = #tpu.pipeline_mode<synchronous>, transform_indices = @transform_1, window_bounds = array<i64: 64, 512>}, {pipeline_mode = #tpu.pipeline_mode<synchronous>, transform_indices = @transform_2, window_bounds = array<i64: 64, 1>}, {pipeline_mode = #tpu.pipeline_mode<synchronous>, transform_indices = @transform_3, window_bounds = array<i64: 64, 1>}, {transform_indices = @transform_4, window_bounds = array<i64: 64, 128>}]} {
    %c0 = arith.constant 0 : index
    %c0_0 = arith.constant 0 : index
    %0 = vector.load %arg2[%c0, %c0_0] : memref<64x512xf32, #tpu.memory_space<vmem>>, vector<64x512xf32>
    %c0_1 = arith.constant 0 : index
    %c0_2 = arith.constant 0 : index
    %1 = vector.load %arg1[%c0_1, %c0_2] : memref<512x128xf32, #tpu.memory_space<vmem>>, vector<512x128xf32>
    %cst = arith.constant dense<0.000000e+00> : vector<64x128xf32>
    %2 = tpu.matmul %0, %1, %cst {dimension_numbers = #tpu.dot_dimension_numbers<[1], [0], [0], [1], [0, 0, 1, 1], [], []>} : vector<64x512xf32>, vector<512x128xf32>, vector<64x128xf32> -> vector<64x128xf32>
    %3 = tpu.iota {dimensions = array<i32: 1>} : vector<64x128xi32>
    %c18_i32 = arith.constant 18 : i32
    %4 = vector.broadcast %c18_i32 : i32 to vector<64x128xi32>
    %5 = arith.cmpi slt, %3, %4 : vector<64x128xi32>
    %cst_3 = arith.constant 0.000000e+00 : f32
    %6 = vector.broadcast %cst_3 : f32 to vector<64x128xf32>
    %7 = arith.select %5, %2, %6 : vector<64x128xi1>, vector<64x128xf32>
    %cst_4 = arith.constant dense<0.000000e+00> : vector<64xf32>
    %8 = vector.multi_reduction <add>, %7, %cst_4 [1] : vector<64x128xf32> to vector<64xf32>
    %9 = vector.shape_cast %8 : vector<64xf32> to vector<64x1xf32>
    %cst_5 = arith.constant 0.055555556 : f32
    %10 = vector.broadcast %cst_5 : f32 to vector<64x1xf32>
    %11 = arith.mulf %9, %10 : vector<64x1xf32>
    %12 = vector.broadcast %11 : vector<64x1xf32> to vector<64x128xf32>
    %13 = arith.subf %2, %12 : vector<64x128xf32>
    %cst_6 = arith.constant 0.000000e+00 : f32
    %14 = vector.broadcast %cst_6 : f32 to vector<64x128xf32>
    %15 = arith.select %5, %13, %14 : vector<64x128xi1>, vector<64x128xf32>
    %16 = arith.mulf %15, %15 : vector<64x128xf32>
    %cst_7 = arith.constant dense<0.000000e+00> : vector<64xf32>
    %17 = vector.multi_reduction <add>, %16, %cst_7 [1] : vector<64x128xf32> to vector<64xf32>
    %18 = vector.shape_cast %17 : vector<64xf32> to vector<64x1xf32>
    %cst_8 = arith.constant 0.055555556 : f32
    %19 = vector.broadcast %cst_8 : f32 to vector<64x1xf32>
    %20 = arith.mulf %18, %19 : vector<64x1xf32>
    %c0_9 = arith.constant 0 : index
    %c0_10 = arith.constant 0 : index
    %21 = vector.load %arg3[%c0_9, %c0_10] : memref<64x1xf32, #tpu.memory_space<vmem>>, vector<64x1xf32>
    %cst_11 = arith.constant 9.99999974E-6 : f32
    %22 = vector.broadcast %cst_11 : f32 to vector<64x1xf32>
    %23 = arith.addf %20, %22 : vector<64x1xf32>
    %24 = math.rsqrt %23 : vector<64x1xf32>
    %25 = arith.mulf %21, %24 : vector<64x1xf32>
    %c0_12 = arith.constant 0 : index
    %c0_13 = arith.constant 0 : index
    %26 = vector.load %arg4[%c0_12, %c0_13] : memref<64x1xf32, #tpu.memory_space<vmem>>, vector<64x1xf32>
    %27 = arith.mulf %11, %25 : vector<64x1xf32>
    %28 = arith.subf %26, %27 : vector<64x1xf32>
    %29 = vector.broadcast %25 : vector<64x1xf32> to vector<64x128xf32>
    %30 = arith.mulf %2, %29 : vector<64x128xf32>
    %31 = vector.broadcast %28 : vector<64x1xf32> to vector<64x128xf32>
    %32 = arith.addf %30, %31 : vector<64x128xf32>
    %cst_14 = arith.constant 0.000000e+00 : f32
    %33 = vector.broadcast %cst_14 : f32 to vector<64x128xf32>
    %34 = arith.cmpf oge, %32, %33 : vector<64x128xf32>
    %cst_15 = arith.constant 2.000000e-01 : f32
    %35 = vector.broadcast %cst_15 : f32 to vector<64x128xf32>
    %36 = arith.mulf %35, %32 : vector<64x128xf32>
    %37 = arith.select %34, %32, %36 : vector<64x128xi1>, vector<64x128xf32>
    %c0_16 = arith.constant 0 : index
    %c0_17 = arith.constant 0 : index
    %38 = vector.load %arg5[%c0_16, %c0_17] : memref<64x128xf32, #tpu.memory_space<vmem>>, vector<64x128xf32>
    tpu.vector_store %arg5[%c0_16, %c0_17], %37 {strides = array<i32>} : memref<64x128xf32, #tpu.memory_space<vmem>>, vector<64x128xf32>,
    return
  }
  func.func @transform_0(%arg0: i32) -> (i32, i32) {
    %c0_i32 = arith.constant 0 : i32
    %c0_i32_0 = arith.constant 0 : i32
    return %c0_i32, %arg0 : i32, i32
  }
  func.func @transform_1(%arg0: i32) -> (i32, i32) {
    %c0_i32 = arith.constant 0 : i32
    %c0_i32_0 = arith.constant 0 : i32
    %c0_i32_1 = arith.constant 0 : i32
    return %c0_i32, %c0_i32_0 : i32, i32
  }
  func.func @transform_2(%arg0: i32) -> (i32, i32) {
    %c0_i32 = arith.constant 0 : i32
    %c0_i32_0 = arith.constant 0 : i32
    %c0_i32_1 = arith.constant 0 : i32
    return %c0_i32, %c0_i32_0 : i32, i32
  }
  func.func @transform_3(%arg0: i32) -> (i32, i32) {
    %c0_i32 = arith.constant 0 : i32
    %c0_i32_0 = arith.constant 0 : i32
    %c0_i32_1 = arith.constant 0 : i32
    return %c0_i32, %c0_i32_0 : i32, i32
  }
  func.func @transform_4(%arg0: i32) -> (i32, i32) {
    %c0_i32 = arith.constant 0 : i32
    %c0_i32_0 = arith.constant 0 : i32
    return %c0_i32, %arg0 : i32, i32
  }
}

module attributes {stable_mosaic.version = 11 : i64} {
  func.func @_conv_fused_kernel(%arg0: i32, %arg1: memref<1024x128xf32, #tpu.memory_space<vmem>>, %arg2: memref<8x1024xf32, #tpu.memory_space<vmem>>, %arg3: memref<8x1xf32, #tpu.memory_space<vmem>>, %arg4: memref<8x1xf32, #tpu.memory_space<vmem>>, %arg5: memref<8x128xf32, #tpu.memory_space<vmem>>) attributes {dimension_semantics = [#tpu.dimension_semantics<parallel>], iteration_bounds = array<i64: 1>, scalar_prefetch = 0 : i64, scratch_operands = 0 : i64, tpu.core_type = #tpu.core_type<tc>, window_params = [{transform_indices = @transform_0, window_bounds = array<i64: 1024, 128>}, {pipeline_mode = #tpu.pipeline_mode<synchronous>, transform_indices = @transform_1, window_bounds = array<i64: 8, 1024>}, {pipeline_mode = #tpu.pipeline_mode<synchronous>, transform_indices = @transform_2, window_bounds = array<i64: 8, 1>}, {pipeline_mode = #tpu.pipeline_mode<synchronous>, transform_indices = @transform_3, window_bounds = array<i64: 8, 1>}, {transform_indices = @transform_4, window_bounds = array<i64: 8, 128>}]} {
    %c0 = arith.constant 0 : index
    %c0_0 = arith.constant 0 : index
    %0 = vector.load %arg2[%c0, %c0_0] : memref<8x1024xf32, #tpu.memory_space<vmem>>, vector<8x1024xf32>
    %c0_1 = arith.constant 0 : index
    %c0_2 = arith.constant 0 : index
    %1 = vector.load %arg1[%c0_1, %c0_2] : memref<1024x128xf32, #tpu.memory_space<vmem>>, vector<1024x128xf32>
    %cst = arith.constant dense<0.000000e+00> : vector<8x128xf32>
    %2 = tpu.matmul %0, %1, %cst {dimension_numbers = #tpu.dot_dimension_numbers<[1], [0], [0], [1], [0, 0, 1, 1], [], []>} : vector<8x1024xf32>, vector<1024x128xf32>, vector<8x128xf32> -> vector<8x128xf32>
    %c0_3 = arith.constant 0 : index
    %c0_4 = arith.constant 0 : index
    %3 = vector.load %arg4[%c0_3, %c0_4] : memref<8x1xf32, #tpu.memory_space<vmem>>, vector<8x1xf32>
    %4 = vector.broadcast %3 : vector<8x1xf32> to vector<8x128xf32>
    %5 = arith.addf %2, %4 : vector<8x128xf32>
    %c0_5 = arith.constant 0 : index
    %c0_6 = arith.constant 0 : index
    %6 = vector.load %arg5[%c0_5, %c0_6] : memref<8x128xf32, #tpu.memory_space<vmem>>, vector<8x128xf32>
    tpu.vector_store %arg5[%c0_5, %c0_6], %5 {strides = array<i32>} : memref<8x128xf32, #tpu.memory_space<vmem>>, vector<8x128xf32>,
    return
  }
  func.func @transform_0(%arg0: i32) -> (i32, i32) {
    %c0_i32 = arith.constant 0 : i32
    %c0_i32_0 = arith.constant 0 : i32
    return %c0_i32, %arg0 : i32, i32
  }
  func.func @transform_1(%arg0: i32) -> (i32, i32) {
    %c0_i32 = arith.constant 0 : i32
    %c0_i32_0 = arith.constant 0 : i32
    %c0_i32_1 = arith.constant 0 : i32
    return %c0_i32, %c0_i32_0 : i32, i32
  }
  func.func @transform_2(%arg0: i32) -> (i32, i32) {
    %c0_i32 = arith.constant 0 : i32
    %c0_i32_0 = arith.constant 0 : i32
    %c0_i32_1 = arith.constant 0 : i32
    return %c0_i32, %c0_i32_0 : i32, i32
  }
  func.func @transform_3(%arg0: i32) -> (i32, i32) {
    %c0_i32 = arith.constant 0 : i32
    %c0_i32_0 = arith.constant 0 : i32
    %c0_i32_1 = arith.constant 0 : i32
    return %c0_i32, %c0_i32_0 : i32, i32
  }
  func.func @transform_4(%arg0: i32) -> (i32, i32) {
    %c0_i32 = arith.constant 0 : i32
    %c0_i32_0 = arith.constant 0 : i32
    return %c0_i32, %arg0 : i32, i32
  }
}

</mosaic_0001>

<llo_original>
// kernel: nlayer_discriminator_forward.5
$region0: #{nlayer_discriminator_forward.5}
  #allocation0 [shape = 'u32[]', space=smem, size = 0x4, offset = 0x4, fixed_abs, tag = 'smem constant byte address 0x4 - core index']
  #allocation1 [shape = 'u32[144,128]{1,0:T(1,128)}', space=vmem, size = 0x12000, scoped, tag = 'internal scratch']
  %s0 = inlined_call_operand.vmem [shape: f32[128,512], index: 0, kind: input, shape index: {}]
  %s1 = inlined_call_operand.vmem [shape: f32[8,128], index: 1, kind: input, shape index: {}]
  %s2 = inlined_call_operand.vmem [shape: f32[8,1], index: 2, kind: input, shape index: {}]
  %s3 = inlined_call_operand.vmem [shape: f32[8,1], index: 3, kind: input, shape index: {}]
  %s4 = inlined_call_operand.vmem [shape: f32[8,512], index: 4, kind: output, shape index: {}]
  %s5 = sld [smem:[#allocation0]]
  $region72: #{nlayer_discriminator_forward.5} parent=0
    _
  %s7 = ssub.s32 1, %s5
  %s8 = scalar_select 0, %s7, %s5
  $region1: #{nlayer_discriminator_forward.5} parent=0
    #allocation2 [shape = 'u8[262144]{0}', space=vmem, size = 0x40000, scoped, tag = 'input window, operand 0']
    loop: start=0, step=1, limit=4
    $region2: #{nlayer_discriminator_forward.5} parent=1 // loop_pre_header
      _
    $region3: #{nlayer_discriminator_forward.5} parent=1 // loop_header
      %s10 = sphi 0, %s14
      %p11 = scmp.ge.s32.totalorder %s10, 4
      %s20 = sphi 0, %s22
      %s23 = sphi 0, %s20
      %s24 = sphi 0, %s23
      %s40 = sphi 0, %s24
      %s44 = sphi 0, %s44
      %s46 = sphi 0, %s44
      %s47 = sphi 0, %s46
      %s61 = sphi 0, %s47
      %s65 = sphi 0, %s65
      %s67 = sphi 0, %s65
      %s68 = sphi 0, %s67
      %s82 = sphi 0, %s68
      %s86 = sphi 0, %s86
      %s88 = sphi 0, %s86
      %s89 = sphi 0, %s88
      %s103 = sphi 0, %s89
      %s109 = sphi 0, %s111
      %s112 = sphi 0, %s109
      %s113 = sphi 0, %s112
      %s129 = sphi 0, %s113
    $region4: #{nlayer_discriminator_forward.5} parent=1 // loop_header_branch
      %13 = sbr.rel (%p11) target = $region8
    $region5: #{nlayer_discriminator_forward.5} parent=1 // loop_body
      %s15 = ssub.s32 %s10, 1
      %s16 = ssub.s32 %s10, 2
      %s17 = sadd.s32 %s10, 1
      %s18 = ssub.s32 %s10, %s17
      %p19 = scmp.eq.s32.totalorder %s18, 0
      %s21 = sadd.s32 %s20, 1
      %s22 = scalar_select %p19, %s20, %s21
      %p25 = pneg %p19
      %p26 = scmp.eq.s32.totalorder %s10, 1
      %p27 = por %p25, %p26
      %p28 = scmp.ne.s32.totalorder %s20, %s23
      %p29 = scmp.eq.s32.totalorder %s10, 0
      %p30 = por %p28, %p29
      %p31 = scmp.ne.s32.totalorder %s20, %s23
      %p32 = scmp.eq.s32.totalorder %s15, 1
      %p33 = por %p31, %p32
      %p34 = scmp.ne.s32.totalorder %s23, %s24
      %p35 = scmp.eq.s32.totalorder %s15, 0
      %p36 = por %p34, %p35
      %p37 = scmp.ne.s32.totalorder %s23, %s24
      %p38 = scmp.eq.s32.totalorder %s16, 1
      %p39 = por %p37, %p38
      %p41 = scmp.ne.s32.totalorder %s24, %s40
      %p42 = scmp.eq.s32.totalorder %s16, 0
      %p43 = por %p41, %p42
      %s45 = sadd.s32 %s44, 1
      %p48 = scmp.eq.s32.totalorder %s10, 1
      %p49 = scmp.ne.s32.totalorder %s44, %s46
      %p50 = scmp.eq.s32.totalorder %s10, 0
      %p51 = por %p49, %p50
      %p52 = scmp.ne.s32.totalorder %s44, %s46
      %p53 = scmp.eq.s32.totalorder %s15, 1
      %p54 = por %p52, %p53
      %p55 = scmp.ne.s32.totalorder %s46, %s47
      %p56 = scmp.eq.s32.totalorder %s15, 0
      %p57 = por %p55, %p56
      %p58 = scmp.ne.s32.totalorder %s46, %s47
      %p59 = scmp.eq.s32.totalorder %s16, 1
      %p60 = por %p58, %p59
      %p62 = scmp.ne.s32.totalorder %s47, %s61
      %p63 = scmp.eq.s32.totalorder %s16, 0
      %p64 = por %p62, %p63
      %s66 = sadd.s32 %s65, 1
      %p69 = scmp.eq.s32.totalorder %s10, 1
      %p70 = scmp.ne.s32.totalorder %s65, %s67
      %p71 = scmp.eq.s32.totalorder %s10, 0
      %p72 = por %p70, %p71
      %p73 = scmp.ne.s32.totalorder %s65, %s67
      %p74 = scmp.eq.s32.totalorder %s15, 1
      %p75 = por %p73, %p74
      %p76 = scmp.ne.s32.totalorder %s67, %s68
      %p77 = scmp.eq.s32.totalorder %s15, 0
      %p78 = por %p76, %p77
      %p79 = scmp.ne.s32.totalorder %s67, %s68
      %p80 = scmp.eq.s32.totalorder %s16, 1
      %p81 = por %p79, %p80
      %p83 = scmp.ne.s32.totalorder %s68, %s82
      %p84 = scmp.eq.s32.totalorder %s16, 0
      %p85 = por %p83, %p84
      %s87 = sadd.s32 %s86, 1
      %p90 = scmp.eq.s32.totalorder %s10, 1
      %p91 = scmp.ne.s32.totalorder %s86, %s88
      %p92 = scmp.eq.s32.totalorder %s10, 0
      %p93 = por %p91, %p92
      %p94 = scmp.ne.s32.totalorder %s86, %s88
      %p95 = scmp.eq.s32.totalorder %s15, 1
      %p96 = por %p94, %p95
      %p97 = scmp.ne.s32.totalorder %s88, %s89
      %p98 = scmp.eq.s32.totalorder %s15, 0
      %p99 = por %p97, %p98
      %p100 = scmp.ne.s32.totalorder %s88, %s89
      %p101 = scmp.eq.s32.totalorder %s16, 1
      %p102 = por %p100, %p101
      %p104 = scmp.ne.s32.totalorder %s89, %s103
      %p105 = scmp.eq.s32.totalorder %s16, 0
      %p106 = por %p104, %p105
      %s107 = ssub.s32 %s10, %s17
      %p108 = scmp.eq.s32.totalorder %s107, 0
      %s110 = sadd.s32 %s109, 1
      %s111 = scalar_select %p108, %s109, %s110
      %p114 = pneg %p108
      %p115 = scmp.eq.s32.totalorder %s10, 1
      %p116 = por %p114, %p115
      %p117 = scmp.ne.s32.totalorder %s109, %s112
      %p118 = scmp.eq.s32.totalorder %s10, 0
      %p119 = por %p117, %p118
      %p120 = scmp.ne.s32.totalorder %s109, %s112
      %p121 = scmp.eq.s32.totalorder %s15, 1
      %p122 = por %p120, %p121
      %p123 = scmp.ne.s32.totalorder %s112, %s113
      %p124 = scmp.eq.s32.totalorder %s15, 0
      %p125 = por %p123, %p124
      %p126 = scmp.ne.s32.totalorder %s112, %s113
      %p127 = scmp.eq.s32.totalorder %s16, 1
      %p128 = por %p126, %p127
      %p130 = scmp.ne.s32.totalorder %s113, %s129
      %p131 = scmp.eq.s32.totalorder %s16, 0
      %p132 = por %p130, %p131
      %p133 = scmp.le.s32.totalorder 1, %s10
      %p134 = scmp.lt.s32.totalorder %s10, 3
      %p135 = pnand %p133, %p134
      %p136 = pneg %p135
      // Predicated region
      $region9: #{nlayer_discriminator_forward.5} parent=5 // pred_check
        _
      $region10: #{nlayer_discriminator_forward.5} parent=5 // pred_check_branch
        %138 = sbr.rel (%p135) target = $region12
      $region11: #{nlayer_discriminator_forward.5} parent=5 // pred_region
        %s139 = ssub.s32 %s10, 1
        // Predicated region
        $region13: #{nlayer_discriminator_forward.5} parent=11 // pred_check
          %p140 = pneg %p57
        $region14: #{nlayer_discriminator_forward.5} parent=11 // pred_check_branch
          %142 = sbr.rel (%p140) target = $region16
        $region15: #{nlayer_discriminator_forward.5} parent=11 // pred_region
          _
        $region16: #{nlayer_discriminator_forward.5} parent=11 // pred_fallthru
          _
        // Predicated region
        $region17: #{nlayer_discriminator_forward.5} parent=11 // pred_check
          %p143 = pneg %p78
        $region18: #{nlayer_discriminator_forward.5} parent=11 // pred_check_branch
          %145 = sbr.rel (%p143) target = $region20
        $region19: #{nlayer_discriminator_forward.5} parent=11 // pred_region
          _
        $region20: #{nlayer_discriminator_forward.5} parent=11 // pred_fallthru
          _
        // Predicated region
        $region21: #{nlayer_discriminator_forward.5} parent=11 // pred_check
          %p146 = pneg %p99
        $region22: #{nlayer_discriminator_forward.5} parent=11 // pred_check_branch
          %148 = sbr.rel (%p146) target = $region24
        $region23: #{nlayer_discriminator_forward.5} parent=11 // pred_region
          _
        $region24: #{nlayer_discriminator_forward.5} parent=11 // pred_fallthru
          _
      $region12: #{nlayer_discriminator_forward.5} parent=5 // pred_fallthru
        _
      %p149 = scmp.lt.s32.totalorder %s10, 2
      // Predicated region
      $region25: #{nlayer_discriminator_forward.5} parent=5 // pred_check
        %p150 = pneg %p149
      $region26: #{nlayer_discriminator_forward.5} parent=5 // pred_check_branch
        %152 = sbr.rel (%p150) target = $region28
      $region27: #{nlayer_discriminator_forward.5} parent=5 // pred_region
        // Predicated region
        $region29: #{nlayer_discriminator_forward.5} parent=27 // pred_check
          %p153 = pneg %p30
        $region30: #{nlayer_discriminator_forward.5} parent=27 // pred_check_branch
          %155 = sbr.rel (%p153) target = $region32
        $region31: #{nlayer_discriminator_forward.5} parent=27 // pred_region
          %s156 = sand.u32 %s20, 1
          %s157 = sand.u32 %s20, 1
          %s158 = smul.addr %s157, 256
          %s159 = scalar_lea.vmem [#allocation2], %s158
          %s160 = smul.u32 2, %s10
          %s161 = smul.addr %s160, 8
          %s162 = scalar_lea.vmem %s0, %s161
          // Predicated region
          $region33: #{nlayer_discriminator_forward.5} parent=31 // pred_check
            _
          $region34: #{nlayer_discriminator_forward.5} parent=31 // pred_check_branch
            %164 = sbr.rel (0) target = $region36
          $region35: #{nlayer_discriminator_forward.5} parent=31 // pred_region
            // Predicated region
            $region37: #{nlayer_discriminator_forward.5} parent=35 // pred_check
              _
            $region38: #{nlayer_discriminator_forward.5} parent=35 // pred_check_branch
              %166 = sbr.rel (0) target = $region40
            $region39: #{nlayer_discriminator_forward.5} parent=35 // pred_region
              loop: start=0, step=1, limit=1
              $region41: #{nlayer_discriminator_forward.5} parent=39 // loop_pre_header
                _
              $region42: #{nlayer_discriminator_forward.5} parent=39 // loop_header
                %s168 = sphi 0, %s172
                %p169 = scmp.ge.s32.totalorder %s168, 1
                %s173 = sphi %s162, %s162
                %s174 = sphi %s159, %s159
              $region43: #{nlayer_discriminator_forward.5} parent=39 // loop_header_branch
                %171 = sbr.rel (%p169) target = $region47
              $region44: #{nlayer_discriminator_forward.5} parent=39 // loop_body
                %v175 = vld [vmem:[%s173] sm:$0xff]
                %176 = vst [vmem:[%s174] sm:$0xff] %v175
                %v177 = vld [vmem:[%s173 + $0x8] sm:$0xff]
                %178 = vst [vmem:[%s174 + $0x8] sm:$0xff] %v177
                %v179 = vld [vmem:[%s173 + $0x20] sm:$0xff]
                %180 = vst [vmem:[%s174 + $0x10] sm:$0xff] %v179
                %v181 = vld [vmem:[%s173 + $0x28] sm:$0xff]
                %182 = vst [vmem:[%s174 + $0x18] sm:$0xff] %v181
                %v183 = vld [vmem:[%s173 + $0x40] sm:$0xff]
                %184 = vst [vmem:[%s174 + $0x20] sm:$0xff] %v183
                %v185 = vld [vmem:[%s173 + $0x48] sm:$0xff]
                %186 = vst [vmem:[%s174 + $0x28] sm:$0xff] %v185
                %v187 = vld [vmem:[%s173 + $0x60] sm:$0xff]
                %188 = vst [vmem:[%s174 + $0x30] sm:$0xff] %v187
                %v189 = vld [vmem:[%s173 + $0x68] sm:$0xff]
                %190 = vst [vmem:[%s174 + $0x38] sm:$0xff] %v189
                %v191 = vld [vmem:[%s173 + $0x80] sm:$0xff]
                %192 = vst [vmem:[%s174 + $0x40] sm:$0xff] %v191
                %v193 = vld [vmem:[%s173 + $0x88] sm:$0xff]
                %194 = vst [vmem:[%s174 + $0x48] sm:$0xff] %v193
                %v195 = vld [vmem:[%s173 + $0xa0] sm:$0xff]
                %196 = vst [vmem:[%s174 + $0x50] sm:$0xff] %v195
                %v197 = vld [vmem:[%s173 + $0xa8] sm:$0xff]
                %198 = vst [vmem:[%s174 + $0x58] sm:$0xff] %v197
                %v199 = vld [vmem:[%s173 + $0xc0] sm:$0xff]
                %200 = vst [vmem:[%s174 + $0x60] sm:$0xff] %v199
                %v201 = vld [vmem:[%s173 + $0xc8] sm:$0xff]
                %202 = vst [vmem:[%s174 + $0x68] sm:$0xff] %v201
                %v203 = vld [vmem:[%s173 + $0xe0] sm:$0xff]
                %204 = vst [vmem:[%s174 + $0x70] sm:$0xff] %v203
                %v205 = vld [vmem:[%s173 + $0xe8] sm:$0xff]
                %206 = vst [vmem:[%s174 + $0x78] sm:$0xff] %v205
                %v207 = vld [vmem:[%s173 + $0x100] sm:$0xff]
                %208 = vst [vmem:[%s174 + $0x80] sm:$0xff] %v207
                %v209 = vld [vmem:[%s173 + $0x108] sm:$0xff]
                %210 = vst [vmem:[%s174 + $0x88] sm:$0xff] %v209
                %v211 = vld [vmem:[%s173 + $0x120] sm:$0xff]
                %212 = vst [vmem:[%s174 + $0x90] sm:$0xff] %v211
                %v213 = vld [vmem:[%s173 + $0x128] sm:$0xff]
                %214 = vst [vmem:[%s174 + $0x98] sm:$0xff] %v213
                %v215 = vld [vmem:[%s173 + $0x140] sm:$0xff]
                %216 = vst [vmem:[%s174 + $0xa0] sm:$0xff] %v215
                %v217 = vld [vmem:[%s173 + $0x148] sm:$0xff]
                %218 = vst [vmem:[%s174 + $0xa8] sm:$0xff] %v217
                %v219 = vld [vmem:[%s173 + $0x160] sm:$0xff]
                %220 = vst [vmem:[%s174 + $0xb0] sm:$0xff] %v219
                %v221 = vld [vmem:[%s173 + $0x168] sm:$0xff]
                %222 = vst [vmem:[%s174 + $0xb8] sm:$0xff] %v221
                %v223 = vld [vmem:[%s173 + $0x180] sm:$0xff]
                %224 = vst [vmem:[%s174 + $0xc0] sm:$0xff] %v223
                %v225 = vld [vmem:[%s173 + $0x188] sm:$0xff]
                %226 = vst [vmem:[%s174 + $0xc8] sm:$0xff] %v225
                %v227 = vld [vmem:[%s173 + $0x1a0] sm:$0xff]
                %228 = vst [vmem:[%s174 + $0xd0] sm:$0xff] %v227
                %v229 = vld [vmem:[%s173 + $0x1a8] sm:$0xff]
                %230 = vst [vmem:[%s174 + $0xd8] sm:$0xff] %v229
                %v231 = vld [vmem:[%s173 + $0x1c0] sm:$0xff]
                %232 = vst [vmem:[%s174 + $0xe0] sm:$0xff] %v231
                %v233 = vld [vmem:[%s173 + $0x1c8] sm:$0xff]
                %234 = vst [vmem:[%s174 + $0xe8] sm:$0xff] %v233
                %v235 = vld [vmem:[%s173 + $0x1e0] sm:$0xff]
                %236 = vst [vmem:[%s174 + $0xf0] sm:$0xff] %v235
                %v237 = vld [vmem:[%s173 + $0x1e8] sm:$0xff]
                %238 = vst [vmem:[%s174 + $0xf8] sm:$0xff] %v237
              $region45: #{nlayer_discriminator_forward.5} parent=39 // loop_footer
                %s172 = sadd.s32 1, %s168
              $region46: #{nlayer_discriminator_forward.5} parent=39 // loop_footer_branch
                %167 = sbr.rel target = $region42
              $region47: #{nlayer_discriminator_forward.5} parent=39 // loop_exit
                _
            $region40: #{nlayer_discriminator_forward.5} parent=35 // pred_fallthru
              _
            // Predicated region
            $region48: #{nlayer_discriminator_forward.5} parent=35 // pred_check
              _
            $region49: #{nlayer_discriminator_forward.5} parent=35 // pred_check_branch
              %240 = sbr.rel target = $region51
            $region50: #{nlayer_discriminator_forward.5} parent=35 // pred_region
              _
            $region51: #{nlayer_discriminator_forward.5} parent=35 // pred_fallthru
              _
          $region36: #{nlayer_discriminator_forward.5} parent=31 // pred_fallthru
            _
          %241 = vnop
        $region32: #{nlayer_discriminator_forward.5} parent=27 // pred_fallthru
          _
      $region28: #{nlayer_discriminator_forward.5} parent=5 // pred_fallthru
        _
      %p242 = scmp.le.s32.totalorder 1, %s10
      %p243 = scmp.lt.s32.totalorder %s10, 3
      %p244 = pnand %p242, %p243
      %p245 = pneg %p244
      // Predicated region
      $region52: #{nlayer_discriminator_forward.5} parent=5 // pred_check
        _
      $region53: #{nlayer_discriminator_forward.5} parent=5 // pred_check_branch
        %247 = sbr.rel (%p244) target = $region55
      $region54: #{nlayer_discriminator_forward.5} parent=5 // pred_region
        %s248 = ssub.s32 %s10, 1
        %s249 = sand.u32 %s23, 1
        %s250 = sand.u32 %s23, 1
        %s251 = smul.addr %s250, 256
        %s252 = scalar_lea.vmem [#allocation2], %s251
        // Predicated region
        $region56: #{nlayer_discriminator_forward.5} parent=54 // pred_check
          %p253 = pneg %p36
        $region57: #{nlayer_discriminator_forward.5} parent=54 // pred_check_branch
          %255 = sbr.rel (%p253) target = $region59
        $region58: #{nlayer_discriminator_forward.5} parent=54 // pred_region
          _
        $region59: #{nlayer_discriminator_forward.5} parent=54 // pred_fallthru
          _
        %s256 = sand.u32 %s23, 1
        %s257 = sand.u32 %s23, 1
        %s258 = smul.addr %s257, 256
        %s259 = scalar_lea.vmem [#allocation2], %s258
        %p260 = pneg %p36
        %p261 = pneg %p33
        %p262 = pneg %p57
        %p263 = pneg %p54
        %p264 = pneg %p78
        %p265 = pneg %p75
        %p266 = pneg %p99
        %p267 = pneg %p96
        %p268 = pneg %p125
        %p269 = pneg %p122
        %s270 = smul.u32 2, %s15
        %p271 = scmp.lt.s32.totalorder %s270, 3
        %s272 = scalar_select %p271, %s270, 3
        %s273 = smul.addr %s272, 8
        %s274 = scalar_lea.vmem %s4, %s273
        %s275 = smul.u32 2, %s15
        %s276 = smul.u32 2, %s15
        %p277 = scmp.lt.s32.totalorder %s276, 3
        %s278 = scalar_select %p277, %s276, 3
        %s279 = smul.addr %s278, 8
        %s280 = scalar_lea.vmem %s4, %s279
        %s281 = smul.u32 2, %s15
        %v282 = vld [vmem:[%s1] sm:$0xff]
        %v283 = vld [vmem:[%s252] sm:$0xff]
        %v284 = vld [vmem:[%s252 + $0x8] sm:$0xff]
        %v285 = vld [vmem:[%s252 + $0x10] sm:$0xff]
        %v286 = vld [vmem:[%s252 + $0x18] sm:$0xff]
        %v287 = vld [vmem:[%s252 + $0x20] sm:$0xff]
        %v288 = vld [vmem:[%s252 + $0x28] sm:$0xff]
        %v289 = vld [vmem:[%s252 + $0x30] sm:$0xff]
        %v290 = vld [vmem:[%s252 + $0x38] sm:$0xff]
        %v291 = vld [vmem:[%s252 + $0x40] sm:$0xff]
        %v292 = vld [vmem:[%s252 + $0x48] sm:$0xff]
        %v293 = vld [vmem:[%s252 + $0x50] sm:$0xff]
        %v294 = vld [vmem:[%s252 + $0x58] sm:$0xff]
        %v295 = vld [vmem:[%s252 + $0x60] sm:$0xff]
        %v296 = vld [vmem:[%s252 + $0x68] sm:$0xff]
        %v297 = vld [vmem:[%s252 + $0x70] sm:$0xff]
        %v298 = vld [vmem:[%s252 + $0x78] sm:$0xff]
        %v299 = vld [vmem:[%s252 + $0x80] sm:$0xff]
        %v300 = vld [vmem:[%s252 + $0x88] sm:$0xff]
        %v301 = vld [vmem:[%s252 + $0x90] sm:$0xff]
        %v302 = vld [vmem:[%s252 + $0x98] sm:$0xff]
        %v303 = vld [vmem:[%s252 + $0xa0] sm:$0xff]
        %v304 = vld [vmem:[%s252 + $0xa8] sm:$0xff]
        %v305 = vld [vmem:[%s252 + $0xb0] sm:$0xff]
        %v306 = vld [vmem:[%s252 + $0xb8] sm:$0xff]
        %v307 = vld [vmem:[%s252 + $0xc0] sm:$0xff]
        %v308 = vld [vmem:[%s252 + $0xc8] sm:$0xff]
        %v309 = vld [vmem:[%s252 + $0xd0] sm:$0xff]
        %v310 = vld [vmem:[%s252 + $0xd8] sm:$0xff]
        %v311 = vld [vmem:[%s252 + $0xe0] sm:$0xff]
        %v312 = vld [vmem:[%s252 + $0xe8] sm:$0xff]
        %v313 = vld [vmem:[%s252 + $0xf0] sm:$0xff]
        %v314 = vld [vmem:[%s252 + $0xf8] sm:$0xff]
        %v315 = vld [vmem:[%s3] sm:$0xff]
        %317 = vset.pattern.permute.xlu0 0
        %318 = vperm.xlu0 %317, %v315
        %v319 = vpop.permute.xlu0 %318
        %321 = vmatprep.subr.mxu0 %v284
        %322 = vmatpush1.msra.mxu0 %v283
        %323 = vmatprep.subr.mxu0 %v286
        %324 = vmatpush1.msra.mxu0 %v285
        %325 = vmatprep.subr.mxu0 %v288
        %326 = vmatpush1.msra.mxu0 %v287
        %327 = vmatprep.subr.mxu0 %v290
        %328 = vmatpush1.msra.mxu0 %v289
        %329 = vmatprep.subr.mxu0 %v292
        %330 = vmatpush1.msra.mxu0 %v291
        %331 = vmatprep.subr.mxu0 %v294
        %332 = vmatpush1.msra.mxu0 %v293
        %333 = vmatprep.subr.mxu0 %v296
        %334 = vmatpush1.msra.mxu0 %v295
        %335 = vmatprep.subr.mxu0 %v298
        %336 = vmatpush1.msra.mxu0 %v297
        %337 = vmatprep.subr.mxu0 %v300
        %338 = vmatpush1.msra.mxu0 %v299
        %339 = vmatprep.subr.mxu0 %v302
        %340 = vmatpush1.msra.mxu0 %v301
        %341 = vmatprep.subr.mxu0 %v304
        %342 = vmatpush1.msra.mxu0 %v303
        %343 = vmatprep.subr.mxu0 %v306
        %344 = vmatpush1.msra.mxu0 %v305
        %345 = vmatprep.subr.mxu0 %v308
        %346 = vmatpush1.msra.mxu0 %v307
        %347 = vmatprep.subr.mxu0 %v310
        %348 = vmatpush1.msra.mxu0 %v309
        %349 = vmatprep.subr.mxu0 %v312
        %350 = vmatpush1.msra.mxu0 %v311
        %351 = vmatprep.subr.mxu0 %v314
        %352 = vmatpush1.msra.mxu0 %v313
        %353 = vmatprep.subr.mxu0 0.0
        %354 = vmatpush1.msra.mxu0 0.0
        %355 = vmatprep.subr.mxu0 0.0
        %356 = vmatpush1.msra.mxu0 0.0
        %357 = vmatprep.subr.mxu0 0.0
        %358 = vmatpush1.msra.mxu0 0.0
        %359 = vmatprep.subr.mxu0 0.0
        %360 = vmatpush1.msra.mxu0 0.0
        %361 = vmatprep.subr.mxu0 0.0
        %362 = vmatpush1.msra.mxu0 0.0
        %363 = vmatprep.subr.mxu0 0.0
        %364 = vmatpush1.msra.mxu0 0.0
        %365 = vmatprep.subr.mxu0 0.0
        %366 = vmatpush1.msra.mxu0 0.0
        %367 = vmatprep.subr.mxu0 0.0
        %368 = vmatpush1.msra.mxu0 0.0
        %369 = vmatprep.subr.mxu0 0.0
        %370 = vmatpush1.msra.mxu0 0.0
        %371 = vmatprep.subr.mxu0 0.0
        %372 = vmatpush1.msra.mxu0 0.0
        %373 = vmatprep.subr.mxu0 0.0
        %374 = vmatpush1.msra.mxu0 0.0
        %375 = vmatprep.subr.mxu0 0.0
        %376 = vmatpush1.msra.mxu0 0.0
        %377 = vmatprep.subr.mxu0 0.0
        %378 = vmatpush1.msra.mxu0 0.0
        %379 = vmatprep.subr.mxu0 0.0
        %380 = vmatpush1.msra.mxu0 0.0
        %381 = vmatprep.subr.mxu0 0.0
        %382 = vmatpush1.msra.mxu0 0.0
        %383 = vmatprep.subr.mxu0 0.0
        %384 = vmatpush1.msra.mxu0 0.0
        %385 = vmatprep.mubr.f32.mxu0 0.0
        %386 = vmatmul.mubr.f32.gmra.mrb[0].mxu0 %v282
        %v387 = vpop.f32.mrb[0].mxu0
        %v388 = vadd.f32 %v319, %v387
        %v389 = vpop.f32.mrb[0].mxu0
        %v390 = vadd.f32 %v319, %v389
        %391 = vdwg.mxu0
        %vm392 = vcmp.ge.f32.partialorder %v388, 0.0
        %vm393 = vcmp.ge.f32.partialorder %v390, 0.0
        %v394 = vmul.f32 %v388, 0.2
        %v395 = vmul.f32 %v390, 0.2
        %v396 = vsel %vm392, %v388, %v394
        %v397 = vsel %vm393, %v390, %v395
        %398 = vst [vmem:[%s280] sm:$0xff] %v396
        %399 = vst [vmem:[%s280 + $0x8] sm:$0xff] %v397
        %s400 = smul.u32 2, %s15
        %p401 = scmp.lt.s32.totalorder %s400, 3
        %s402 = scalar_select %p401, %s400, 3
        %s403 = smul.addr %s402, 8
        %s404 = scalar_lea.vmem %s4, %s403
        // Predicated region
        $region60: #{nlayer_discriminator_forward.5} parent=54 // pred_check
          %p405 = pneg %p122
        $region61: #{nlayer_discriminator_forward.5} parent=54 // pred_check_branch
          %407 = sbr.rel (%p405) target = $region63
        $region62: #{nlayer_discriminator_forward.5} parent=54 // pred_region
          %s408 = smul.u32 2, %s15
        $region63: #{nlayer_discriminator_forward.5} parent=54 // pred_fallthru
          _
      $region55: #{nlayer_discriminator_forward.5} parent=5 // pred_fallthru
        _
      %p409 = scmp.le.s32.totalorder 2, %s10
      // Predicated region
      $region64: #{nlayer_discriminator_forward.5} parent=5 // pred_check
        %p410 = pneg %p409
      $region65: #{nlayer_discriminator_forward.5} parent=5 // pred_check_branch
        %412 = sbr.rel (%p410) target = $region67
      $region66: #{nlayer_discriminator_forward.5} parent=5 // pred_region
        %s413 = ssub.s32 %s10, 2
        // Predicated region
        $region68: #{nlayer_discriminator_forward.5} parent=66 // pred_check
          %p414 = pneg %p128
        $region69: #{nlayer_discriminator_forward.5} parent=66 // pred_check_branch
          %416 = sbr.rel (%p414) target = $region71
        $region70: #{nlayer_discriminator_forward.5} parent=66 // pred_region
          %s417 = smul.u32 2, %s16
          %p418 = scmp.lt.s32.totalorder %s417, 3
          %s419 = scalar_select %p418, %s417, 3
          %s420 = smul.addr %s419, 8
          %s421 = scalar_lea.vmem %s4, %s420
        $region71: #{nlayer_discriminator_forward.5} parent=66 // pred_fallthru
          _
      $region67: #{nlayer_discriminator_forward.5} parent=5 // pred_fallthru
        _
    $region6: #{nlayer_discriminator_forward.5} parent=1 // loop_footer
      %s14 = sadd.s32 1, %s10
    $region7: #{nlayer_discriminator_forward.5} parent=1 // loop_footer_branch
      %9 = sbr.rel target = $region3
    $region8: #{nlayer_discriminator_forward.5} parent=1 // loop_exit
      _

// kernel: nlayer_discriminator_forward.6
$region0: #{nlayer_discriminator_forward.6}
  #allocation0 [shape = 'u32[]', space=smem, size = 0x4, offset = 0x4, fixed_abs, tag = 'smem constant byte address 0x4 - core index']
  #allocation1 [shape = 'u32[144,128]{1,0:T(1,128)}', space=vmem, size = 0x12000, scoped, tag = 'internal scratch']
  %s0 = inlined_call_operand.vmem [shape: f32[128,128], index: 0, kind: input, shape index: {}]
  %s1 = inlined_call_operand.vmem [shape: f32[16,128], index: 1, kind: input, shape index: {}]
  %s2 = inlined_call_operand.vmem [shape: f32[16,1], index: 2, kind: input, shape index: {}]
  %s3 = inlined_call_operand.vmem [shape: f32[16,1], index: 3, kind: input, shape index: {}]
  %s4 = inlined_call_operand.vmem [shape: f32[16,128], index: 4, kind: output, shape index: {}]
  %s5 = sld [smem:[#allocation0]]
  $region26: #{nlayer_discriminator_forward.6} parent=0
    _
  %s7 = ssub.s32 1, %s5
  %s8 = scalar_select 0, %s7, %s5
  // Predicated region
  $region2: #{nlayer_discriminator_forward.6} parent=0 // pred_check
    _
  $region3: #{nlayer_discriminator_forward.6} parent=0 // pred_check_branch
    %10 = sbr.rel (0) target = $region5
  $region4: #{nlayer_discriminator_forward.6} parent=0 // pred_region
    _
  $region5: #{nlayer_discriminator_forward.6} parent=0 // pred_fallthru
    _
  // Predicated region
  $region6: #{nlayer_discriminator_forward.6} parent=0 // pred_check
    _
  $region7: #{nlayer_discriminator_forward.6} parent=0 // pred_check_branch
    %12 = sbr.rel (0) target = $region9
  $region8: #{nlayer_discriminator_forward.6} parent=0 // pred_region
    _
  $region9: #{nlayer_discriminator_forward.6} parent=0 // pred_fallthru
    _
  // Predicated region
  $region10: #{nlayer_discriminator_forward.6} parent=0 // pred_check
    _
  $region11: #{nlayer_discriminator_forward.6} parent=0 // pred_check_branch
    %14 = sbr.rel (0) target = $region13
  $region12: #{nlayer_discriminator_forward.6} parent=0 // pred_region
    _
  $region13: #{nlayer_discriminator_forward.6} parent=0 // pred_fallthru
    _
  // Predicated region
  $region14: #{nlayer_discriminator_forward.6} parent=0 // pred_check
    _
  $region15: #{nlayer_discriminator_forward.6} parent=0 // pred_check_branch
    %16 = sbr.rel (0) target = $region17
  $region16: #{nlayer_discriminator_forward.6} parent=0 // pred_region
    _
  $region17: #{nlayer_discriminator_forward.6} parent=0 // pred_fallthru
    _
  %v17 = vld [vmem:[%s1] sm:$0xff]
  %v18 = vld [vmem:[%s1 + $0x8] sm:$0xff]
  %v19 = vld [vmem:[%s0] sm:$0xff]
  %v20 = vld [vmem:[%s0 + $0x8] sm:$0xff]
  %v21 = vld [vmem:[%s0 + $0x10] sm:$0xff]
  %v22 = vld [vmem:[%s0 + $0x18] sm:$0xff]
  %v23 = vld [vmem:[%s0 + $0x20] sm:$0xff]
  %v24 = vld [vmem:[%s0 + $0x28] sm:$0xff]
  %v25 = vld [vmem:[%s0 + $0x30] sm:$0xff]
  %v26 = vld [vmem:[%s0 + $0x38] sm:$0xff]
  %v27 = vld [vmem:[%s0 + $0x40] sm:$0xff]
  %v28 = vld [vmem:[%s0 + $0x48] sm:$0xff]
  %v29 = vld [vmem:[%s0 + $0x50] sm:$0xff]
  %v30 = vld [vmem:[%s0 + $0x58] sm:$0xff]
  %v31 = vld [vmem:[%s0 + $0x60] sm:$0xff]
  %v32 = vld [vmem:[%s0 + $0x68] sm:$0xff]
  %v33 = vld [vmem:[%s0 + $0x70] sm:$0xff]
  %v34 = vld [vmem:[%s0 + $0x78] sm:$0xff]
  %35 = vmatprep.subr.mxu0 0.0
  %36 = vmatpush1.msra.mxu0 %v19
  %37 = vmatprep.subr.mxu0 0.0
  %38 = vmatpush1.msra.mxu0 %v20
  %39 = vmatprep.subr.mxu0 0.0
  %40 = vmatpush1.msra.mxu0 %v21
  %41 = vmatprep.subr.mxu0 0.0
  %42 = vmatpush1.msra.mxu0 %v22
  %43 = vmatprep.subr.mxu0 0.0
  %44 = vmatpush1.msra.mxu0 %v23
  %45 = vmatprep.subr.mxu0 0.0
  %46 = vmatpush1.msra.mxu0 %v24
  %47 = vmatprep.subr.mxu0 0.0
  %48 = vmatpush1.msra.mxu0 %v25
  %49 = vmatprep.subr.mxu0 0.0
  %50 = vmatpush1.msra.mxu0 %v26
  %51 = vmatprep.subr.mxu0 0.0
  %52 = vmatpush1.msra.mxu0 %v27
  %53 = vmatprep.subr.mxu0 0.0
  %54 = vmatpush1.msra.mxu0 %v28
  %55 = vmatprep.subr.mxu0 0.0
  %56 = vmatpush1.msra.mxu0 %v29
  %57 = vmatprep.subr.mxu0 0.0
  %58 = vmatpush1.msra.mxu0 %v30
  %59 = vmatprep.subr.mxu0 0.0
  %60 = vmatpush1.msra.mxu0 %v31
  %61 = vmatprep.subr.mxu0 0.0
  %62 = vmatpush1.msra.mxu0 %v32
  %63 = vmatprep.subr.mxu0 0.0
  %64 = vmatpush1.msra.mxu0 %v33
  %65 = vmatprep.subr.mxu0 0.0
  %66 = vmatpush1.msra.mxu0 %v34
  %67 = vmatprep.subr.mxu0 0.0
  %68 = vmatpush1.msra.mxu0 0.0
  %69 = vmatprep.subr.mxu0 0.0
  %70 = vmatpush1.msra.mxu0 0.0
  %71 = vmatprep.subr.mxu0 0.0
  %72 = vmatpush1.msra.mxu0 0.0
  %73 = vmatprep.subr.mxu0 0.0
  %74 = vmatpush1.msra.mxu0 0.0
  %75 = vmatprep.subr.mxu0 0.0
  %76 = vmatpush1.msra.mxu0 0.0
  %77 = vmatprep.subr.mxu0 0.0
  %78 = vmatpush1.msra.mxu0 0.0
  %79 = vmatprep.subr.mxu0 0.0
  %80 = vmatpush1.msra.mxu0 0.0
  %81 = vmatprep.subr.mxu0 0.0
  %82 = vmatpush1.msra.mxu0 0.0
  %83 = vmatprep.subr.mxu0 0.0
  %84 = vmatpush1.msra.mxu0 0.0
  %85 = vmatprep.subr.mxu0 0.0
  %86 = vmatpush1.msra.mxu0 0.0
  %87 = vmatprep.subr.mxu0 0.0
  %88 = vmatpush1.msra.mxu0 0.0
  %89 = vmatprep.subr.mxu0 0.0
  %90 = vmatpush1.msra.mxu0 0.0
  %91 = vmatprep.subr.mxu0 0.0
  %92 = vmatpush1.msra.mxu0 0.0
  %93 = vmatprep.subr.mxu0 0.0
  %94 = vmatpush1.msra.mxu0 0.0
  %95 = vmatprep.subr.mxu0 0.0
  %96 = vmatpush1.msra.mxu0 0.0
  %97 = vmatprep.subr.mxu0 0.0
  %98 = vmatpush1.msra.mxu0 0.0
  %99 = vmatprep.mubr.f32.mxu0 0.0
  %100 = vmatmul.mubr.f32.gmra.mrb[0].mxu0 %v17
  %v101 = vpop.f32.mrb[0].mxu0
  %v102 = vadd.f32 0.0, %v101
  %v103 = vpop.f32.mrb[0].mxu0
  %104 = vmatprep.mubr.f32.mxu0 0.0
  %105 = vmatmul.mubr.f32.gmra.mrb[0].mxu0 %v18
  %v106 = vpop.f32.mrb[0].mxu0
  %v107 = vadd.f32 0.0, %v106
  %v108 = vpop.f32.mrb[0].mxu0
  %109 = vdwg.mxu0
  %v110 = vlaneseq
  %v111 = vand.u32 %v110, 127
  %vm112 = vcmp.lt.s32.totalorder %v111, 128
  %v113 = vsel %vm112, %v102, 0.0
  %v114 = vsel %vm112, %v107, 0.0
  %115 = vadd.xlane.f32.xlu0 %v113
  %v116 = vpop.xlane.xlu0 %115
  %117 = vadd.xlane.f32.xlu0 %v114
  %v118 = vpop.xlane.xlu0 %117
  %v119 = vmul.f32 %v116, 0.0078125
  %v120 = vmul.f32 %v118, 0.0078125
  %v121 = vsub.f32 %v102, %v119
  %v122 = vsub.f32 %v107, %v120
  %v123 = vsel %vm112, %v121, 0.0
  %v124 = vsel %vm112, %v122, 0.0
  %v125 = vmul.f32 %v123, %v123
  %v126 = vmul.f32 %v124, %v124
  %127 = vadd.xlane.f32.xlu0 %v125
  %v128 = vpop.xlane.xlu0 %127
  %129 = vadd.xlane.f32.xlu0 %v126
  %v130 = vpop.xlane.xlu0 %129
  %v131 = vmul.f32 %v128, 0.0078125
  %v132 = vmul.f32 %v130, 0.0078125
  %v133 = vld [vmem:[%s2] sm:$0xff]
  %v134 = vld [vmem:[%s2 + $0x8] sm:$0xff]
  %v135 = vadd.f32 %v131, 1e-05
  %v136 = vadd.f32 %v132, 1e-05
  %v137 = vrsqrt.pop %v135
  %v138 = vrsqrt.pop %v136
  %v139 = vmul.f32 %v133, %v137
  %v140 = vmul.f32 %v134, %v138
  %v141 = vld [vmem:[%s3] sm:$0xff]
  %v142 = vld [vmem:[%s3 + $0x8] sm:$0xff]
  %v143 = vmul.f32 %v119, %v139
  %v144 = vmul.f32 %v120, %v140
  %v145 = vsub.f32 %v141, %v143
  %v146 = vsub.f32 %v142, %v144
  %148 = vset.pattern.permute.xlu0 0
  %149 = vperm.xlu0 %148, %v139
  %v150 = vpop.permute.xlu0 %149
  %153 = vset.pattern.permute.xlu0 0
  %154 = vperm.xlu0 %153, %v140
  %v155 = vpop.permute.xlu0 %154
  %v157 = vmul.f32 %v102, %v150
  %v158 = vmul.f32 %v107, %v155
  %160 = vset.pattern.permute.xlu0 0
  %161 = vperm.xlu0 %160, %v145
  %v162 = vpop.permute.xlu0 %161
  %165 = vset.pattern.permute.xlu0 0
  %166 = vperm.xlu0 %165, %v146
  %v167 = vpop.permute.xlu0 %166
  %v169 = vadd.f32 %v157, %v162
  %v170 = vadd.f32 %v158, %v167
  %vm171 = vcmp.ge.f32.partialorder %v169, 0.0
  %vm172 = vcmp.ge.f32.partialorder %v170, 0.0
  %v173 = vmul.f32 %v169, 0.2
  %v174 = vmul.f32 %v170, 0.2
  %v175 = vsel %vm171, %v169, %v173
  %v176 = vsel %vm172, %v170, %v174
  %177 = vst [vmem:[%s4] sm:$0xff] %v175
  %178 = vst [vmem:[%s4 + $0x8] sm:$0xff] %v176
  // Predicated region
  $region18: #{nlayer_discriminator_forward.6} parent=0 // pred_check
    _
  $region19: #{nlayer_discriminator_forward.6} parent=0 // pred_check_branch
    %180 = sbr.rel (0) target = $region21
  $region20: #{nlayer_discriminator_forward.6} parent=0 // pred_region
    _
  $region21: #{nlayer_discriminator_forward.6} parent=0 // pred_fallthru
    _
  // Predicated region
  $region22: #{nlayer_discriminator_forward.6} parent=0 // pred_check
    _
  $region23: #{nlayer_discriminator_forward.6} parent=0 // pred_check_branch
    %182 = sbr.rel (0) target = $region25
  $region24: #{nlayer_discriminator_forward.6} parent=0 // pred_region
    _
  $region25: #{nlayer_discriminator_forward.6} parent=0 // pred_fallthru
    _

// kernel: nlayer_discriminator_forward.7
$region0: #{nlayer_discriminator_forward.7}
  #allocation0 [shape = 'u32[]', space=smem, size = 0x4, offset = 0x4, fixed_abs, tag = 'smem constant byte address 0x4 - core index']
  #allocation1 [shape = 'u32[144,128]{1,0:T(1,128)}', space=vmem, size = 0x12000, scoped, tag = 'internal scratch']
  %s0 = inlined_call_operand.vmem [shape: f32[256,128], index: 0, kind: input, shape index: {}]
  %s1 = inlined_call_operand.vmem [shape: f32[32,256], index: 1, kind: input, shape index: {}]
  %s2 = inlined_call_operand.vmem [shape: f32[32,1], index: 2, kind: input, shape index: {}]
  %s3 = inlined_call_operand.vmem [shape: f32[32,1], index: 3, kind: input, shape index: {}]
  %s4 = inlined_call_operand.vmem [shape: f32[32,128], index: 4, kind: output, shape index: {}]
  %s5 = sld [smem:[#allocation0]]
  $region26: #{nlayer_discriminator_forward.7} parent=0
    _
  %s7 = ssub.s32 1, %s5
  %s8 = scalar_select 0, %s7, %s5
  // Predicated region
  $region2: #{nlayer_discriminator_forward.7} parent=0 // pred_check
    _
  $region3: #{nlayer_discriminator_forward.7} parent=0 // pred_check_branch
    %10 = sbr.rel (0) target = $region5
  $region4: #{nlayer_discriminator_forward.7} parent=0 // pred_region
    _
  $region5: #{nlayer_discriminator_forward.7} parent=0 // pred_fallthru
    _
  // Predicated region
  $region6: #{nlayer_discriminator_forward.7} parent=0 // pred_check
    _
  $region7: #{nlayer_discriminator_forward.7} parent=0 // pred_check_branch
    %12 = sbr.rel (0) target = $region9
  $region8: #{nlayer_discriminator_forward.7} parent=0 // pred_region
    _
  $region9: #{nlayer_discriminator_forward.7} parent=0 // pred_fallthru
    _
  // Predicated region
  $region10: #{nlayer_discriminator_forward.7} parent=0 // pred_check
    _
  $region11: #{nlayer_discriminator_forward.7} parent=0 // pred_check_branch
    %14 = sbr.rel (0) target = $region13
  $region12: #{nlayer_discriminator_forward.7} parent=0 // pred_region
    _
  $region13: #{nlayer_discriminator_forward.7} parent=0 // pred_fallthru
    _
  // Predicated region
  $region14: #{nlayer_discriminator_forward.7} parent=0 // pred_check
    _
  $region15: #{nlayer_discriminator_forward.7} parent=0 // pred_check_branch
    %16 = sbr.rel (0) target = $region17
  $region16: #{nlayer_discriminator_forward.7} parent=0 // pred_region
    _
  $region17: #{nlayer_discriminator_forward.7} parent=0 // pred_fallthru
    _
  %v17 = vld [vmem:[%s1] sm:$0xff]
  %v18 = vld [vmem:[%s1 + $0x8] sm:$0xff]
  %v19 = vld [vmem:[%s1 + $0x10] sm:$0xff]
  %v20 = vld [vmem:[%s1 + $0x18] sm:$0xff]
  %v21 = vld [vmem:[%s1 + $0x20] sm:$0xff]
  %v22 = vld [vmem:[%s1 + $0x28] sm:$0xff]
  %v23 = vld [vmem:[%s1 + $0x30] sm:$0xff]
  %v24 = vld [vmem:[%s1 + $0x38] sm:$0xff]
  %v25 = vld [vmem:[%s0] sm:$0xff]
  %v26 = vld [vmem:[%s0 + $0x8] sm:$0xff]
  %v27 = vld [vmem:[%s0 + $0x10] sm:$0xff]
  %v28 = vld [vmem:[%s0 + $0x18] sm:$0xff]
  %v29 = vld [vmem:[%s0 + $0x20] sm:$0xff]
  %v30 = vld [vmem:[%s0 + $0x28] sm:$0xff]
  %v31 = vld [vmem:[%s0 + $0x30] sm:$0xff]
  %v32 = vld [vmem:[%s0 + $0x38] sm:$0xff]
  %v33 = vld [vmem:[%s0 + $0x40] sm:$0xff]
  %v34 = vld [vmem:[%s0 + $0x48] sm:$0xff]
  %v35 = vld [vmem:[%s0 + $0x50] sm:$0xff]
  %v36 = vld [vmem:[%s0 + $0x58] sm:$0xff]
  %v37 = vld [vmem:[%s0 + $0x60] sm:$0xff]
  %v38 = vld [vmem:[%s0 + $0x68] sm:$0xff]
  %v39 = vld [vmem:[%s0 + $0x70] sm:$0xff]
  %v40 = vld [vmem:[%s0 + $0x78] sm:$0xff]
  %v41 = vld [vmem:[%s0 + $0x80] sm:$0xff]
  %v42 = vld [vmem:[%s0 + $0x88] sm:$0xff]
  %v43 = vld [vmem:[%s0 + $0x90] sm:$0xff]
  %v44 = vld [vmem:[%s0 + $0x98] sm:$0xff]
  %v45 = vld [vmem:[%s0 + $0xa0] sm:$0xff]
  %v46 = vld [vmem:[%s0 + $0xa8] sm:$0xff]
  %v47 = vld [vmem:[%s0 + $0xb0] sm:$0xff]
  %v48 = vld [vmem:[%s0 + $0xb8] sm:$0xff]
  %v49 = vld [vmem:[%s0 + $0xc0] sm:$0xff]
  %v50 = vld [vmem:[%s0 + $0xc8] sm:$0xff]
  %v51 = vld [vmem:[%s0 + $0xd0] sm:$0xff]
  %v52 = vld [vmem:[%s0 + $0xd8] sm:$0xff]
  %v53 = vld [vmem:[%s0 + $0xe0] sm:$0xff]
  %v54 = vld [vmem:[%s0 + $0xe8] sm:$0xff]
  %v55 = vld [vmem:[%s0 + $0xf0] sm:$0xff]
  %v56 = vld [vmem:[%s0 + $0xf8] sm:$0xff]
  %57 = vmatprep.subr.mxu0 0.0
  %58 = vmatpush1.msra.mxu0 %v25
  %59 = vmatprep.subr.mxu0 0.0
  %60 = vmatpush1.msra.mxu0 %v26
  %61 = vmatprep.subr.mxu0 0.0
  %62 = vmatpush1.msra.mxu0 %v27
  %63 = vmatprep.subr.mxu0 0.0
  %64 = vmatpush1.msra.mxu0 %v28
  %65 = vmatprep.subr.mxu0 0.0
  %66 = vmatpush1.msra.mxu0 %v29
  %67 = vmatprep.subr.mxu0 0.0
  %68 = vmatpush1.msra.mxu0 %v30
  %69 = vmatprep.subr.mxu0 0.0
  %70 = vmatpush1.msra.mxu0 %v31
  %71 = vmatprep.subr.mxu0 0.0
  %72 = vmatpush1.msra.mxu0 %v32
  %73 = vmatprep.subr.mxu0 0.0
  %74 = vmatpush1.msra.mxu0 %v33
  %75 = vmatprep.subr.mxu0 0.0
  %76 = vmatpush1.msra.mxu0 %v34
  %77 = vmatprep.subr.mxu0 0.0
  %78 = vmatpush1.msra.mxu0 %v35
  %79 = vmatprep.subr.mxu0 0.0
  %80 = vmatpush1.msra.mxu0 %v36
  %81 = vmatprep.subr.mxu0 0.0
  %82 = vmatpush1.msra.mxu0 %v37
  %83 = vmatprep.subr.mxu0 0.0
  %84 = vmatpush1.msra.mxu0 %v38
  %85 = vmatprep.subr.mxu0 0.0
  %86 = vmatpush1.msra.mxu0 %v39
  %87 = vmatprep.subr.mxu0 0.0
  %88 = vmatpush1.msra.mxu0 %v40
  %89 = vmatprep.subr.mxu0 0.0
  %90 = vmatpush1.msra.mxu0 %v41
  %91 = vmatprep.subr.mxu0 0.0
  %92 = vmatpush1.msra.mxu0 %v42
  %93 = vmatprep.subr.mxu0 0.0
  %94 = vmatpush1.msra.mxu0 %v43
  %95 = vmatprep.subr.mxu0 0.0
  %96 = vmatpush1.msra.mxu0 %v44
  %97 = vmatprep.subr.mxu0 0.0
  %98 = vmatpush1.msra.mxu0 %v45
  %99 = vmatprep.subr.mxu0 0.0
  %100 = vmatpush1.msra.mxu0 %v46
  %101 = vmatprep.subr.mxu0 0.0
  %102 = vmatpush1.msra.mxu0 %v47
  %103 = vmatprep.subr.mxu0 0.0
  %104 = vmatpush1.msra.mxu0 %v48
  %105 = vmatprep.subr.mxu0 0.0
  %106 = vmatpush1.msra.mxu0 %v49
  %107 = vmatprep.subr.mxu0 0.0
  %108 = vmatpush1.msra.mxu0 %v50
  %109 = vmatprep.subr.mxu0 0.0
  %110 = vmatpush1.msra.mxu0 %v51
  %111 = vmatprep.subr.mxu0 0.0
  %112 = vmatpush1.msra.mxu0 %v52
  %113 = vmatprep.subr.mxu0 0.0
  %114 = vmatpush1.msra.mxu0 %v53
  %115 = vmatprep.subr.mxu0 0.0
  %116 = vmatpush1.msra.mxu0 %v54
  %117 = vmatprep.subr.mxu0 0.0
  %118 = vmatpush1.msra.mxu0 %v55
  %119 = vmatprep.subr.mxu0 0.0
  %120 = vmatpush1.msra.mxu0 %v56
  %121 = vmatprep.mubr.f32.mxu0 %v18
  %122 = vmatmul.mubr.f32.gmra.mrb[0].mxu0 %v17
  %v123 = vpop.f32.mrb[0].mxu0
  %v124 = vadd.f32 0.0, %v123
  %v125 = vpop.f32.mrb[0].mxu0
  %126 = vmatprep.mubr.f32.mxu0 %v20
  %127 = vmatmul.mubr.f32.gmra.mrb[0].mxu0 %v19
  %v128 = vpop.f32.mrb[0].mxu0
  %v129 = vadd.f32 0.0, %v128
  %v130 = vpop.f32.mrb[0].mxu0
  %131 = vmatprep.mubr.f32.mxu0 %v22
  %132 = vmatmul.mubr.f32.gmra.mrb[0].mxu0 %v21
  %v133 = vpop.f32.mrb[0].mxu0
  %v134 = vadd.f32 0.0, %v133
  %v135 = vpop.f32.mrb[0].mxu0
  %136 = vmatprep.mubr.f32.mxu0 %v24
  %137 = vmatmul.mubr.f32.gmra.mrb[0].mxu0 %v23
  %v138 = vpop.f32.mrb[0].mxu0
  %v139 = vadd.f32 0.0, %v138
  %v140 = vpop.f32.mrb[0].mxu0
  %141 = vdwg.mxu0
  %v142 = vlaneseq
  %v143 = vand.u32 %v142, 127
  %vm144 = vcmp.lt.s32.totalorder %v143, 32
  %v145 = vsel %vm144, %v124, 0.0
  %v146 = vsel %vm144, %v129, 0.0
  %v147 = vsel %vm144, %v134, 0.0
  %v148 = vsel %vm144, %v139, 0.0
  %149 = vadd.xlane.f32.xlu0 %v145
  %v150 = vpop.xlane.xlu0 %149
  %151 = vadd.xlane.f32.xlu0 %v146
  %v152 = vpop.xlane.xlu0 %151
  %153 = vadd.xlane.f32.xlu0 %v147
  %v154 = vpop.xlane.xlu0 %153
  %155 = vadd.xlane.f32.xlu0 %v148
  %v156 = vpop.xlane.xlu0 %155
  %v157 = vmul.f32 %v150, 0.03125
  %v158 = vmul.f32 %v152, 0.03125
  %v159 = vmul.f32 %v154, 0.03125
  %v160 = vmul.f32 %v156, 0.03125
  %v161 = vsub.f32 %v124, %v157
  %v162 = vsub.f32 %v129, %v158
  %v163 = vsub.f32 %v134, %v159
  %v164 = vsub.f32 %v139, %v160
  %v165 = vsel %vm144, %v161, 0.0
  %v166 = vsel %vm144, %v162, 0.0
  %v167 = vsel %vm144, %v163, 0.0
  %v168 = vsel %vm144, %v164, 0.0
  %v169 = vmul.f32 %v165, %v165
  %v170 = vmul.f32 %v166, %v166
  %v171 = vmul.f32 %v167, %v167
  %v172 = vmul.f32 %v168, %v168
  %173 = vadd.xlane.f32.xlu0 %v169
  %v174 = vpop.xlane.xlu0 %173
  %175 = vadd.xlane.f32.xlu0 %v170
  %v176 = vpop.xlane.xlu0 %175
  %177 = vadd.xlane.f32.xlu0 %v171
  %v178 = vpop.xlane.xlu0 %177
  %179 = vadd.xlane.f32.xlu0 %v172
  %v180 = vpop.xlane.xlu0 %179
  %v181 = vmul.f32 %v174, 0.03125
  %v182 = vmul.f32 %v176, 0.03125
  %v183 = vmul.f32 %v178, 0.03125
  %v184 = vmul.f32 %v180, 0.03125
  %v185 = vld [vmem:[%s2] sm:$0xff]
  %v186 = vld [vmem:[%s2 + $0x8] sm:$0xff]
  %v187 = vld [vmem:[%s2 + $0x10] sm:$0xff]
  %v188 = vld [vmem:[%s2 + $0x18] sm:$0xff]
  %v189 = vadd.f32 %v181, 1e-05
  %v190 = vadd.f32 %v182, 1e-05
  %v191 = vadd.f32 %v183, 1e-05
  %v192 = vadd.f32 %v184, 1e-05
  %v193 = vrsqrt.pop %v189
  %v194 = vrsqrt.pop %v190
  %v195 = vrsqrt.pop %v191
  %v196 = vrsqrt.pop %v192
  %v197 = vmul.f32 %v185, %v193
  %v198 = vmul.f32 %v186, %v194
  %v199 = vmul.f32 %v187, %v195
  %v200 = vmul.f32 %v188, %v196
  %v201 = vld [vmem:[%s3] sm:$0xff]
  %v202 = vld [vmem:[%s3 + $0x8] sm:$0xff]
  %v203 = vld [vmem:[%s3 + $0x10] sm:$0xff]
  %v204 = vld [vmem:[%s3 + $0x18] sm:$0xff]
  %v205 = vmul.f32 %v157, %v197
  %v206 = vmul.f32 %v158, %v198
  %v207 = vmul.f32 %v159, %v199
  %v208 = vmul.f32 %v160, %v200
  %v209 = vsub.f32 %v201, %v205
  %v210 = vsub.f32 %v202, %v206
  %v211 = vsub.f32 %v203, %v207
  %v212 = vsub.f32 %v204, %v208
  %214 = vset.pattern.permute.xlu0 0
  %215 = vperm.xlu0 %214, %v197
  %v216 = vpop.permute.xlu0 %215
  %219 = vset.pattern.permute.xlu0 0
  %220 = vperm.xlu0 %219, %v198
  %v221 = vpop.permute.xlu0 %220
  %224 = vset.pattern.permute.xlu0 0
  %225 = vperm.xlu0 %224, %v199
  %v226 = vpop.permute.xlu0 %225
  %229 = vset.pattern.permute.xlu0 0
  %230 = vperm.xlu0 %229, %v200
  %v231 = vpop.permute.xlu0 %230
  %v233 = vmul.f32 %v124, %v216
  %v234 = vmul.f32 %v129, %v221
  %v235 = vmul.f32 %v134, %v226
  %v236 = vmul.f32 %v139, %v231
  %238 = vset.pattern.permute.xlu0 0
  %239 = vperm.xlu0 %238, %v209
  %v240 = vpop.permute.xlu0 %239
  %243 = vset.pattern.permute.xlu0 0
  %244 = vperm.xlu0 %243, %v210
  %v245 = vpop.permute.xlu0 %244
  %248 = vset.pattern.permute.xlu0 0
  %249 = vperm.xlu0 %248, %v211
  %v250 = vpop.permute.xlu0 %249
  %253 = vset.pattern.permute.xlu0 0
  %254 = vperm.xlu0 %253, %v212
  %v255 = vpop.permute.xlu0 %254
  %v257 = vadd.f32 %v233, %v240
  %v258 = vadd.f32 %v234, %v245
  %v259 = vadd.f32 %v235, %v250
  %v260 = vadd.f32 %v236, %v255
  %vm261 = vcmp.ge.f32.partialorder %v257, 0.0
  %vm262 = vcmp.ge.f32.partialorder %v258, 0.0
  %vm263 = vcmp.ge.f32.partialorder %v259, 0.0
  %vm264 = vcmp.ge.f32.partialorder %v260, 0.0
  %v265 = vmul.f32 %v257, 0.2
  %v266 = vmul.f32 %v258, 0.2
  %v267 = vmul.f32 %v259, 0.2
  %v268 = vmul.f32 %v260, 0.2
  %v269 = vsel %vm261, %v257, %v265
  %v270 = vsel %vm262, %v258, %v266
  %v271 = vsel %vm263, %v259, %v267
  %v272 = vsel %vm264, %v260, %v268
  %273 = vst [vmem:[%s4] sm:$0xff] %v269
  %274 = vst [vmem:[%s4 + $0x8] sm:$0xff] %v270
  %275 = vst [vmem:[%s4 + $0x10] sm:$0xff] %v271
  %276 = vst [vmem:[%s4 + $0x18] sm:$0xff] %v272
  // Predicated region
  $region18: #{nlayer_discriminator_forward.7} parent=0 // pred_check
    _
  $region19: #{nlayer_discriminator_forward.7} parent=0 // pred_check_branch
    %278 = sbr.rel (0) target = $region21
  $region20: #{nlayer_discriminator_forward.7} parent=0 // pred_region
    _
  $region21: #{nlayer_discriminator_forward.7} parent=0 // pred_fallthru
    _
  // Predicated region
  $region22: #{nlayer_discriminator_forward.7} parent=0 // pred_check
    _
  $region23: #{nlayer_discriminator_forward.7} parent=0 // pred_check_branch
    %280 = sbr.rel (0) target = $region25
  $region24: #{nlayer_discriminator_forward.7} parent=0 // pred_region
    _
  $region25: #{nlayer_discriminator_forward.7} parent=0 // pred_fallthru
    _

// kernel: nlayer_discriminator_forward.8
$region0: #{nlayer_discriminator_forward.8}
  #allocation0 [shape = 'u32[]', space=smem, size = 0x4, offset = 0x4, fixed_abs, tag = 'smem constant byte address 0x4 - core index']
  #allocation1 [shape = 'u32[144,128]{1,0:T(1,128)}', space=vmem, size = 0x12000, scoped, tag = 'internal scratch']
  %s0 = inlined_call_operand.vmem [shape: f32[512,128], index: 0, kind: input, shape index: {}]
  %s1 = inlined_call_operand.vmem [shape: f32[64,512], index: 1, kind: input, shape index: {}]
  %s2 = inlined_call_operand.vmem [shape: f32[64,1], index: 2, kind: input, shape index: {}]
  %s3 = inlined_call_operand.vmem [shape: f32[64,1], index: 3, kind: input, shape index: {}]
  %s4 = inlined_call_operand.vmem [shape: f32[64,128], index: 4, kind: output, shape index: {}]
  %s5 = sld [smem:[#allocation0]]
  $region26: #{nlayer_discriminator_forward.8} parent=0
    _
  %s7 = ssub.s32 1, %s5
  %s8 = scalar_select 0, %s7, %s5
  // Predicated region
  $region2: #{nlayer_discriminator_forward.8} parent=0 // pred_check
    _
  $region3: #{nlayer_discriminator_forward.8} parent=0 // pred_check_branch
    %10 = sbr.rel (0) target = $region5
  $region4: #{nlayer_discriminator_forward.8} parent=0 // pred_region
    _
  $region5: #{nlayer_discriminator_forward.8} parent=0 // pred_fallthru
    _
  // Predicated region
  $region6: #{nlayer_discriminator_forward.8} parent=0 // pred_check
    _
  $region7: #{nlayer_discriminator_forward.8} parent=0 // pred_check_branch
    %12 = sbr.rel (0) target = $region9
  $region8: #{nlayer_discriminator_forward.8} parent=0 // pred_region
    _
  $region9: #{nlayer_discriminator_forward.8} parent=0 // pred_fallthru
    _
  // Predicated region
  $region10: #{nlayer_discriminator_forward.8} parent=0 // pred_check
    _
  $region11: #{nlayer_discriminator_forward.8} parent=0 // pred_check_branch
    %14 = sbr.rel (0) target = $region13
  $region12: #{nlayer_discriminator_forward.8} parent=0 // pred_region
    _
  $region13: #{nlayer_discriminator_forward.8} parent=0 // pred_fallthru
    _
  // Predicated region
  $region14: #{nlayer_discriminator_forward.8} parent=0 // pred_check
    _
  $region15: #{nlayer_discriminator_forward.8} parent=0 // pred_check_branch
    %16 = sbr.rel (0) target = $region17
  $region16: #{nlayer_discriminator_forward.8} parent=0 // pred_region
    _
  $region17: #{nlayer_discriminator_forward.8} parent=0 // pred_fallthru
    _
  %v17 = vld [vmem:[%s1] sm:$0xff]
  %v18 = vld [vmem:[%s1 + $0x8] sm:$0xff]
  %v19 = vld [vmem:[%s1 + $0x10] sm:$0xff]
  %v20 = vld [vmem:[%s1 + $0x18] sm:$0xff]
  %v21 = vld [vmem:[%s1 + $0x20] sm:$0xff]
  %v22 = vld [vmem:[%s1 + $0x28] sm:$0xff]
  %v23 = vld [vmem:[%s1 + $0x30] sm:$0xff]
  %v24 = vld [vmem:[%s1 + $0x38] sm:$0xff]
  %v25 = vld [vmem:[%s1 + $0x40] sm:$0xff]
  %v26 = vld [vmem:[%s1 + $0x48] sm:$0xff]
  %v27 = vld [vmem:[%s1 + $0x50] sm:$0xff]
  %v28 = vld [vmem:[%s1 + $0x58] sm:$0xff]
  %v29 = vld [vmem:[%s1 + $0x60] sm:$0xff]
  %v30 = vld [vmem:[%s1 + $0x68] sm:$0xff]
  %v31 = vld [vmem:[%s1 + $0x70] sm:$0xff]
  %v32 = vld [vmem:[%s1 + $0x78] sm:$0xff]
  %v33 = vld [vmem:[%s1 + $0x80] sm:$0xff]
  %v34 = vld [vmem:[%s1 + $0x88] sm:$0xff]
  %v35 = vld [vmem:[%s1 + $0x90] sm:$0xff]
  %v36 = vld [vmem:[%s1 + $0x98] sm:$0xff]
  %v37 = vld [vmem:[%s1 + $0xa0] sm:$0xff]
  %v38 = vld [vmem:[%s1 + $0xa8] sm:$0xff]
  %v39 = vld [vmem:[%s1 + $0xb0] sm:$0xff]
  %v40 = vld [vmem:[%s1 + $0xb8] sm:$0xff]
  %v41 = vld [vmem:[%s1 + $0xc0] sm:$0xff]
  %v42 = vld [vmem:[%s1 + $0xc8] sm:$0xff]
  %v43 = vld [vmem:[%s1 + $0xd0] sm:$0xff]
  %v44 = vld [vmem:[%s1 + $0xd8] sm:$0xff]
  %v45 = vld [vmem:[%s1 + $0xe0] sm:$0xff]
  %v46 = vld [vmem:[%s1 + $0xe8] sm:$0xff]
  %v47 = vld [vmem:[%s1 + $0xf0] sm:$0xff]
  %v48 = vld [vmem:[%s1 + $0xf8] sm:$0xff]
  %v49 = vld [vmem:[%s0] sm:$0xff]
  %v50 = vld [vmem:[%s0 + $0x8] sm:$0xff]
  %v51 = vld [vmem:[%s0 + $0x10] sm:$0xff]
  %v52 = vld [vmem:[%s0 + $0x18] sm:$0xff]
  %v53 = vld [vmem:[%s0 + $0x20] sm:$0xff]
  %v54 = vld [vmem:[%s0 + $0x28] sm:$0xff]
  %v55 = vld [vmem:[%s0 + $0x30] sm:$0xff]
  %v56 = vld [vmem:[%s0 + $0x38] sm:$0xff]
  %v57 = vld [vmem:[%s0 + $0x40] sm:$0xff]
  %v58 = vld [vmem:[%s0 + $0x48] sm:$0xff]
  %v59 = vld [vmem:[%s0 + $0x50] sm:$0xff]
  %v60 = vld [vmem:[%s0 + $0x58] sm:$0xff]
  %v61 = vld [vmem:[%s0 + $0x60] sm:$0xff]
  %v62 = vld [vmem:[%s0 + $0x68] sm:$0xff]
  %v63 = vld [vmem:[%s0 + $0x70] sm:$0xff]
  %v64 = vld [vmem:[%s0 + $0x78] sm:$0xff]
  %v65 = vld [vmem:[%s0 + $0x80] sm:$0xff]
  %v66 = vld [vmem:[%s0 + $0x88] sm:$0xff]
  %v67 = vld [vmem:[%s0 + $0x90] sm:$0xff]
  %v68 = vld [vmem:[%s0 + $0x98] sm:$0xff]
  %v69 = vld [vmem:[%s0 + $0xa0] sm:$0xff]
  %v70 = vld [vmem:[%s0 + $0xa8] sm:$0xff]
  %v71 = vld [vmem:[%s0 + $0xb0] sm:$0xff]
  %v72 = vld [vmem:[%s0 + $0xb8] sm:$0xff]
  %v73 = vld [vmem:[%s0 + $0xc0] sm:$0xff]
  %v74 = vld [vmem:[%s0 + $0xc8] sm:$0xff]
  %v75 = vld [vmem:[%s0 + $0xd0] sm:$0xff]
  %v76 = vld [vmem:[%s0 + $0xd8] sm:$0xff]
  %v77 = vld [vmem:[%s0 + $0xe0] sm:$0xff]
  %v78 = vld [vmem:[%s0 + $0xe8] sm:$0xff]
  %v79 = vld [vmem:[%s0 + $0xf0] sm:$0xff]
  %v80 = vld [vmem:[%s0 + $0xf8] sm:$0xff]
  %v81 = vld [vmem:[%s0 + $0x100] sm:$0xff]
  %v82 = vld [vmem:[%s0 + $0x108] sm:$0xff]
  %v83 = vld [vmem:[%s0 + $0x110] sm:$0xff]
  %v84 = vld [vmem:[%s0 + $0x118] sm:$0xff]
  %v85 = vld [vmem:[%s0 + $0x120] sm:$0xff]
  %v86 = vld [vmem:[%s0 + $0x128] sm:$0xff]
  %v87 = vld [vmem:[%s0 + $0x130] sm:$0xff]
  %v88 = vld [vmem:[%s0 + $0x138] sm:$0xff]
  %v89 = vld [vmem:[%s0 + $0x140] sm:$0xff]
  %v90 = vld [vmem:[%s0 + $0x148] sm:$0xff]
  %v91 = vld [vmem:[%s0 + $0x150] sm:$0xff]
  %v92 = vld [vmem:[%s0 + $0x158] sm:$0xff]
  %v93 = vld [vmem:[%s0 + $0x160] sm:$0xff]
  %v94 = vld [vmem:[%s0 + $0x168] sm:$0xff]
  %v95 = vld [vmem:[%s0 + $0x170] sm:$0xff]
  %v96 = vld [vmem:[%s0 + $0x178] sm:$0xff]
  %v97 = vld [vmem:[%s0 + $0x180] sm:$0xff]
  %v98 = vld [vmem:[%s0 + $0x188] sm:$0xff]
  %v99 = vld [vmem:[%s0 + $0x190] sm:$0xff]
  %v100 = vld [vmem:[%s0 + $0x198] sm:$0xff]
  %v101 = vld [vmem:[%s0 + $0x1a0] sm:$0xff]
  %v102 = vld [vmem:[%s0 + $0x1a8] sm:$0xff]
  %v103 = vld [vmem:[%s0 + $0x1b0] sm:$0xff]
  %v104 = vld [vmem:[%s0 + $0x1b8] sm:$0xff]
  %v105 = vld [vmem:[%s0 + $0x1c0] sm:$0xff]
  %v106 = vld [vmem:[%s0 + $0x1c8] sm:$0xff]
  %v107 = vld [vmem:[%s0 + $0x1d0] sm:$0xff]
  %v108 = vld [vmem:[%s0 + $0x1d8] sm:$0xff]
  %v109 = vld [vmem:[%s0 + $0x1e0] sm:$0xff]
  %v110 = vld [vmem:[%s0 + $0x1e8] sm:$0xff]
  %v111 = vld [vmem:[%s0 + $0x1f0] sm:$0xff]
  %v112 = vld [vmem:[%s0 + $0x1f8] sm:$0xff]
  %113 = vmatprep.subr.mxu0 0.0
  %114 = vmatpush1.msra.mxu0 %v49
  %115 = vmatprep.subr.mxu0 0.0
  %116 = vmatpush1.msra.mxu0 %v50
  %117 = vmatprep.subr.mxu0 0.0
  %118 = vmatpush1.msra.mxu0 %v51
  %119 = vmatprep.subr.mxu0 0.0
  %120 = vmatpush1.msra.mxu0 %v52
  %121 = vmatprep.subr.mxu0 0.0
  %122 = vmatpush1.msra.mxu0 %v53
  %123 = vmatprep.subr.mxu0 0.0
  %124 = vmatpush1.msra.mxu0 %v54
  %125 = vmatprep.subr.mxu0 0.0
  %126 = vmatpush1.msra.mxu0 %v55
  %127 = vmatprep.subr.mxu0 0.0
  %128 = vmatpush1.msra.mxu0 %v56
  %129 = vmatprep.subr.mxu0 0.0
  %130 = vmatpush1.msra.mxu0 %v57
  %131 = vmatprep.subr.mxu0 0.0
  %132 = vmatpush1.msra.mxu0 %v58
  %133 = vmatprep.subr.mxu0 0.0
  %134 = vmatpush1.msra.mxu0 %v59
  %135 = vmatprep.subr.mxu0 0.0
  %136 = vmatpush1.msra.mxu0 %v60
  %137 = vmatprep.subr.mxu0 0.0
  %138 = vmatpush1.msra.mxu0 %v61
  %139 = vmatprep.subr.mxu0 0.0
  %140 = vmatpush1.msra.mxu0 %v62
  %141 = vmatprep.subr.mxu0 0.0
  %142 = vmatpush1.msra.mxu0 %v63
  %143 = vmatprep.subr.mxu0 0.0
  %144 = vmatpush1.msra.mxu0 %v64
  %145 = vmatprep.subr.mxu0 0.0
  %146 = vmatpush1.msra.mxu0 %v65
  %147 = vmatprep.subr.mxu0 0.0
  %148 = vmatpush1.msra.mxu0 %v66
  %149 = vmatprep.subr.mxu0 0.0
  %150 = vmatpush1.msra.mxu0 %v67
  %151 = vmatprep.subr.mxu0 0.0
  %152 = vmatpush1.msra.mxu0 %v68
  %153 = vmatprep.subr.mxu0 0.0
  %154 = vmatpush1.msra.mxu0 %v69
  %155 = vmatprep.subr.mxu0 0.0
  %156 = vmatpush1.msra.mxu0 %v70
  %157 = vmatprep.subr.mxu0 0.0
  %158 = vmatpush1.msra.mxu0 %v71
  %159 = vmatprep.subr.mxu0 0.0
  %160 = vmatpush1.msra.mxu0 %v72
  %161 = vmatprep.subr.mxu0 0.0
  %162 = vmatpush1.msra.mxu0 %v73
  %163 = vmatprep.subr.mxu0 0.0
  %164 = vmatpush1.msra.mxu0 %v74
  %165 = vmatprep.subr.mxu0 0.0
  %166 = vmatpush1.msra.mxu0 %v75
  %167 = vmatprep.subr.mxu0 0.0
  %168 = vmatpush1.msra.mxu0 %v76
  %169 = vmatprep.subr.mxu0 0.0
  %170 = vmatpush1.msra.mxu0 %v77
  %171 = vmatprep.subr.mxu0 0.0
  %172 = vmatpush1.msra.mxu0 %v78
  %173 = vmatprep.subr.mxu0 0.0
  %174 = vmatpush1.msra.mxu0 %v79
  %175 = vmatprep.subr.mxu0 0.0
  %176 = vmatpush1.msra.mxu0 %v80
  %177 = vmatprep.mubr.f32.mxu0 %v18
  %178 = vmatmul.mubr.f32.gmra.mrb[0].mxu0 %v17
  %v179 = vpop.f32.mrb[0].mxu0
  %v180 = vadd.f32 0.0, %v179
  %v181 = vpop.f32.mrb[0].mxu0
  %182 = vmatprep.mubr.f32.mxu0 %v22
  %183 = vmatmul.mubr.f32.gmra.mrb[0].mxu0 %v21
  %v184 = vpop.f32.mrb[0].mxu0
  %v185 = vadd.f32 0.0, %v184
  %v186 = vpop.f32.mrb[0].mxu0
  %187 = vmatprep.mubr.f32.mxu0 %v26
  %188 = vmatmul.mubr.f32.gmra.mrb[0].mxu0 %v25
  %v189 = vpop.f32.mrb[0].mxu0
  %v190 = vadd.f32 0.0, %v189
  %v191 = vpop.f32.mrb[0].mxu0
  %192 = vmatprep.mubr.f32.mxu0 %v30
  %193 = vmatmul.mubr.f32.gmra.mrb[0].mxu0 %v29
  %v194 = vpop.f32.mrb[0].mxu0
  %v195 = vadd.f32 0.0, %v194
  %v196 = vpop.f32.mrb[0].mxu0
  %197 = vmatprep.mubr.f32.mxu0 %v34
  %198 = vmatmul.mubr.f32.gmra.mrb[0].mxu0 %v33
  %v199 = vpop.f32.mrb[0].mxu0
  %v200 = vadd.f32 0.0, %v199
  %v201 = vpop.f32.mrb[0].mxu0
  %202 = vmatprep.mubr.f32.mxu0 %v38
  %203 = vmatmul.mubr.f32.gmra.mrb[0].mxu0 %v37
  %v204 = vpop.f32.mrb[0].mxu0
  %v205 = vadd.f32 0.0, %v204
  %v206 = vpop.f32.mrb[0].mxu0
  %207 = vmatprep.mubr.f32.mxu0 %v42
  %208 = vmatmul.mubr.f32.gmra.mrb[0].mxu0 %v41
  %v209 = vpop.f32.mrb[0].mxu0
  %v210 = vadd.f32 0.0, %v209
  %v211 = vpop.f32.mrb[0].mxu0
  %212 = vmatprep.mubr.f32.mxu0 %v46
  %213 = vmatmul.mubr.f32.gmra.mrb[0].mxu0 %v45
  %v214 = vpop.f32.mrb[0].mxu0
  %v215 = vadd.f32 0.0, %v214
  %v216 = vpop.f32.mrb[0].mxu0
  %217 = vdwg.mxu0
  %218 = vmatprep.subr.mxu0 0.0
  %219 = vmatpush1.msra.mxu0 %v81
  %220 = vmatprep.subr.mxu0 0.0
  %221 = vmatpush1.msra.mxu0 %v82
  %222 = vmatprep.subr.mxu0 0.0
  %223 = vmatpush1.msra.mxu0 %v83
  %224 = vmatprep.subr.mxu0 0.0
  %225 = vmatpush1.msra.mxu0 %v84
  %226 = vmatprep.subr.mxu0 0.0
  %227 = vmatpush1.msra.mxu0 %v85
  %228 = vmatprep.subr.mxu0 0.0
  %229 = vmatpush1.msra.mxu0 %v86
  %230 = vmatprep.subr.mxu0 0.0
  %231 = vmatpush1.msra.mxu0 %v87
  %232 = vmatprep.subr.mxu0 0.0
  %233 = vmatpush1.msra.mxu0 %v88
  %234 = vmatprep.subr.mxu0 0.0
  %235 = vmatpush1.msra.mxu0 %v89
  %236 = vmatprep.subr.mxu0 0.0
  %237 = vmatpush1.msra.mxu0 %v90
  %238 = vmatprep.subr.mxu0 0.0
  %239 = vmatpush1.msra.mxu0 %v91
  %240 = vmatprep.subr.mxu0 0.0
  %241 = vmatpush1.msra.mxu0 %v92
  %242 = vmatprep.subr.mxu0 0.0
  %243 = vmatpush1.msra.mxu0 %v93
  %244 = vmatprep.subr.mxu0 0.0
  %245 = vmatpush1.msra.mxu0 %v94
  %246 = vmatprep.subr.mxu0 0.0
  %247 = vmatpush1.msra.mxu0 %v95
  %248 = vmatprep.subr.mxu0 0.0
  %249 = vmatpush1.msra.mxu0 %v96
  %250 = vmatprep.subr.mxu0 0.0
  %251 = vmatpush1.msra.mxu0 %v97
  %252 = vmatprep.subr.mxu0 0.0
  %253 = vmatpush1.msra.mxu0 %v98
  %254 = vmatprep.subr.mxu0 0.0
  %255 = vmatpush1.msra.mxu0 %v99
  %256 = vmatprep.subr.mxu0 0.0
  %257 = vmatpush1.msra.mxu0 %v100
  %258 = vmatprep.subr.mxu0 0.0
  %259 = vmatpush1.msra.mxu0 %v101
  %260 = vmatprep.subr.mxu0 0.0
  %261 = vmatpush1.msra.mxu0 %v102
  %262 = vmatprep.subr.mxu0 0.0
  %263 = vmatpush1.msra.mxu0 %v103
  %264 = vmatprep.subr.mxu0 0.0
  %265 = vmatpush1.msra.mxu0 %v104
  %266 = vmatprep.subr.mxu0 0.0
  %267 = vmatpush1.msra.mxu0 %v105
  %268 = vmatprep.subr.mxu0 0.0
  %269 = vmatpush1.msra.mxu0 %v106
  %270 = vmatprep.subr.mxu0 0.0
  %271 = vmatpush1.msra.mxu0 %v107
  %272 = vmatprep.subr.mxu0 0.0
  %273 = vmatpush1.msra.mxu0 %v108
  %274 = vmatprep.subr.mxu0 0.0
  %275 = vmatpush1.msra.mxu0 %v109
  %276 = vmatprep.subr.mxu0 0.0
  %277 = vmatpush1.msra.mxu0 %v110
  %278 = vmatprep.subr.mxu0 0.0
  %279 = vmatpush1.msra.mxu0 %v111
  %280 = vmatprep.subr.mxu0 0.0
  %281 = vmatpush1.msra.mxu0 %v112
  %282 = vmatprep.mubr.f32.mxu0 %v20
  %283 = vmatmul.mubr.f32.gmra.mrb[0].mxu0 %v19
  %v284 = vpop.f32.mrb[0].mxu0
  %v285 = vadd.f32 %v180, %v284
  %v286 = vpop.f32.mrb[0].mxu0
  %287 = vmatprep.mubr.f32.mxu0 %v24
  %288 = vmatmul.mubr.f32.gmra.mrb[0].mxu0 %v23
  %v289 = vpop.f32.mrb[0].mxu0
  %v290 = vadd.f32 %v185, %v289
  %v291 = vpop.f32.mrb[0].mxu0
  %292 = vmatprep.mubr.f32.mxu0 %v28
  %293 = vmatmul.mubr.f32.gmra.mrb[0].mxu0 %v27
  %v294 = vpop.f32.mrb[0].mxu0
  %v295 = vadd.f32 %v190, %v294
  %v296 = vpop.f32.mrb[0].mxu0
  %297 = vmatprep.mubr.f32.mxu0 %v32
  %298 = vmatmul.mubr.f32.gmra.mrb[0].mxu0 %v31
  %v299 = vpop.f32.mrb[0].mxu0
  %v300 = vadd.f32 %v195, %v299
  %v301 = vpop.f32.mrb[0].mxu0
  %302 = vmatprep.mubr.f32.mxu0 %v36
  %303 = vmatmul.mubr.f32.gmra.mrb[0].mxu0 %v35
  %v304 = vpop.f32.mrb[0].mxu0
  %v305 = vadd.f32 %v200, %v304
  %v306 = vpop.f32.mrb[0].mxu0
  %307 = vmatprep.mubr.f32.mxu0 %v40
  %308 = vmatmul.mubr.f32.gmra.mrb[0].mxu0 %v39
  %v309 = vpop.f32.mrb[0].mxu0
  %v310 = vadd.f32 %v205, %v309
  %v311 = vpop.f32.mrb[0].mxu0
  %312 = vmatprep.mubr.f32.mxu0 %v44
  %313 = vmatmul.mubr.f32.gmra.mrb[0].mxu0 %v43
  %v314 = vpop.f32.mrb[0].mxu0
  %v315 = vadd.f32 %v210, %v314
  %v316 = vpop.f32.mrb[0].mxu0
  %317 = vmatprep.mubr.f32.mxu0 %v48
  %318 = vmatmul.mubr.f32.gmra.mrb[0].mxu0 %v47
  %v319 = vpop.f32.mrb[0].mxu0
  %v320 = vadd.f32 %v215, %v319
  %v321 = vpop.f32.mrb[0].mxu0
  %322 = vdwg.mxu0
  %v323 = vlaneseq
  %v324 = vand.u32 %v323, 127
  %vm325 = vcmp.lt.s32.totalorder %v324, 18
  %v326 = vsel %vm325, %v285, 0.0
  %v327 = vsel %vm325, %v290, 0.0
  %v328 = vsel %vm325, %v295, 0.0
  %v329 = vsel %vm325, %v300, 0.0
  %v330 = vsel %vm325, %v305, 0.0
  %v331 = vsel %vm325, %v310, 0.0
  %v332 = vsel %vm325, %v315, 0.0
  %v333 = vsel %vm325, %v320, 0.0
  %334 = vadd.xlane.f32.xlu0 %v326
  %v335 = vpop.xlane.xlu0 %334
  %336 = vadd.xlane.f32.xlu0 %v327
  %v337 = vpop.xlane.xlu0 %336
  %338 = vadd.xlane.f32.xlu0 %v328
  %v339 = vpop.xlane.xlu0 %338
  %340 = vadd.xlane.f32.xlu0 %v329
  %v341 = vpop.xlane.xlu0 %340
  %342 = vadd.xlane.f32.xlu0 %v330
  %v343 = vpop.xlane.xlu0 %342
  %344 = vadd.xlane.f32.xlu0 %v331
  %v345 = vpop.xlane.xlu0 %344
  %346 = vadd.xlane.f32.xlu0 %v332
  %v347 = vpop.xlane.xlu0 %346
  %348 = vadd.xlane.f32.xlu0 %v333
  %v349 = vpop.xlane.xlu0 %348
  %v350 = vmul.f32 %v335, 0.055555556
  %v351 = vmul.f32 %v337, 0.055555556
  %v352 = vmul.f32 %v339, 0.055555556
  %v353 = vmul.f32 %v341, 0.055555556
  %v354 = vmul.f32 %v343, 0.055555556
  %v355 = vmul.f32 %v345, 0.055555556
  %v356 = vmul.f32 %v347, 0.055555556
  %v357 = vmul.f32 %v349, 0.055555556
  %v358 = vsub.f32 %v285, %v350
  %v359 = vsub.f32 %v290, %v351
  %v360 = vsub.f32 %v295, %v352
  %v361 = vsub.f32 %v300, %v353
  %v362 = vsub.f32 %v305, %v354
  %v363 = vsub.f32 %v310, %v355
  %v364 = vsub.f32 %v315, %v356
  %v365 = vsub.f32 %v320, %v357
  %v366 = vsel %vm325, %v358, 0.0
  %v367 = vsel %vm325, %v359, 0.0
  %v368 = vsel %vm325, %v360, 0.0
  %v369 = vsel %vm325, %v361, 0.0
  %v370 = vsel %vm325, %v362, 0.0
  %v371 = vsel %vm325, %v363, 0.0
  %v372 = vsel %vm325, %v364, 0.0
  %v373 = vsel %vm325, %v365, 0.0
  %v374 = vmul.f32 %v366, %v366
  %v375 = vmul.f32 %v367, %v367
  %v376 = vmul.f32 %v368, %v368
  %v377 = vmul.f32 %v369, %v369
  %v378 = vmul.f32 %v370, %v370
  %v379 = vmul.f32 %v371, %v371
  %v380 = vmul.f32 %v372, %v372
  %v381 = vmul.f32 %v373, %v373
  %382 = vadd.xlane.f32.xlu0 %v374
  %v383 = vpop.xlane.xlu0 %382
  %384 = vadd.xlane.f32.xlu0 %v375
  %v385 = vpop.xlane.xlu0 %384
  %386 = vadd.xlane.f32.xlu0 %v376
  %v387 = vpop.xlane.xlu0 %386
  %388 = vadd.xlane.f32.xlu0 %v377
  %v389 = vpop.xlane.xlu0 %388
  %390 = vadd.xlane.f32.xlu0 %v378
  %v391 = vpop.xlane.xlu0 %390
  %392 = vadd.xlane.f32.xlu0 %v379
  %v393 = vpop.xlane.xlu0 %392
  %394 = vadd.xlane.f32.xlu0 %v380
  %v395 = vpop.xlane.xlu0 %394
  %396 = vadd.xlane.f32.xlu0 %v381
  %v397 = vpop.xlane.xlu0 %396
  %v398 = vmul.f32 %v383, 0.055555556
  %v399 = vmul.f32 %v385, 0.055555556
  %v400 = vmul.f32 %v387, 0.055555556
  %v401 = vmul.f32 %v389, 0.055555556
  %v402 = vmul.f32 %v391, 0.055555556
  %v403 = vmul.f32 %v393, 0.055555556
  %v404 = vmul.f32 %v395, 0.055555556
  %v405 = vmul.f32 %v397, 0.055555556
  %v406 = vld [vmem:[%s2] sm:$0xff]
  %v407 = vld [vmem:[%s2 + $0x8] sm:$0xff]
  %v408 = vld [vmem:[%s2 + $0x10] sm:$0xff]
  %v409 = vld [vmem:[%s2 + $0x18] sm:$0xff]
  %v410 = vld [vmem:[%s2 + $0x20] sm:$0xff]
  %v411 = vld [vmem:[%s2 + $0x28] sm:$0xff]
  %v412 = vld [vmem:[%s2 + $0x30] sm:$0xff]
  %v413 = vld [vmem:[%s2 + $0x38] sm:$0xff]
  %v414 = vadd.f32 %v398, 1e-05
  %v415 = vadd.f32 %v399, 1e-05
  %v416 = vadd.f32 %v400, 1e-05
  %v417 = vadd.f32 %v401, 1e-05
  %v418 = vadd.f32 %v402, 1e-05
  %v419 = vadd.f32 %v403, 1e-05
  %v420 = vadd.f32 %v404, 1e-05
  %v421 = vadd.f32 %v405, 1e-05
  %v422 = vrsqrt.pop %v414
  %v423 = vrsqrt.pop %v415
  %v424 = vrsqrt.pop %v416
  %v425 = vrsqrt.pop %v417
  %v426 = vrsqrt.pop %v418
  %v427 = vrsqrt.pop %v419
  %v428 = vrsqrt.pop %v420
  %v429 = vrsqrt.pop %v421
  %v430 = vmul.f32 %v406, %v422
  %v431 = vmul.f32 %v407, %v423
  %v432 = vmul.f32 %v408, %v424
  %v433 = vmul.f32 %v409, %v425
  %v434 = vmul.f32 %v410, %v426
  %v435 = vmul.f32 %v411, %v427
  %v436 = vmul.f32 %v412, %v428
  %v437 = vmul.f32 %v413, %v429
  %v438 = vld [vmem:[%s3] sm:$0xff]
  %v439 = vld [vmem:[%s3 + $0x8] sm:$0xff]
  %v440 = vld [vmem:[%s3 + $0x10] sm:$0xff]
  %v441 = vld [vmem:[%s3 + $0x18] sm:$0xff]
  %v442 = vld [vmem:[%s3 + $0x20] sm:$0xff]
  %v443 = vld [vmem:[%s3 + $0x28] sm:$0xff]
  %v444 = vld [vmem:[%s3 + $0x30] sm:$0xff]
  %v445 = vld [vmem:[%s3 + $0x38] sm:$0xff]
  %v446 = vmul.f32 %v350, %v430
  %v447 = vmul.f32 %v351, %v431
  %v448 = vmul.f32 %v352, %v432
  %v449 = vmul.f32 %v353, %v433
  %v450 = vmul.f32 %v354, %v434
  %v451 = vmul.f32 %v355, %v435
  %v452 = vmul.f32 %v356, %v436
  %v453 = vmul.f32 %v357, %v437
  %v454 = vsub.f32 %v438, %v446
  %v455 = vsub.f32 %v439, %v447
  %v456 = vsub.f32 %v440, %v448
  %v457 = vsub.f32 %v441, %v449
  %v458 = vsub.f32 %v442, %v450
  %v459 = vsub.f32 %v443, %v451
  %v460 = vsub.f32 %v444, %v452
  %v461 = vsub.f32 %v445, %v453
  %463 = vset.pattern.permute.xlu0 0
  %464 = vperm.xlu0 %463, %v430
  %v465 = vpop.permute.xlu0 %464
  %468 = vset.pattern.permute.xlu0 0
  %469 = vperm.xlu0 %468, %v431
  %v470 = vpop.permute.xlu0 %469
  %473 = vset.pattern.permute.xlu0 0
  %474 = vperm.xlu0 %473, %v432
  %v475 = vpop.permute.xlu0 %474
  %478 = vset.pattern.permute.xlu0 0
  %479 = vperm.xlu0 %478, %v433
  %v480 = vpop.permute.xlu0 %479
  %483 = vset.pattern.permute.xlu0 0
  %484 = vperm.xlu0 %483, %v434
  %v485 = vpop.permute.xlu0 %484
  %488 = vset.pattern.permute.xlu0 0
  %489 = vperm.xlu0 %488, %v435
  %v490 = vpop.permute.xlu0 %489
  %493 = vset.pattern.permute.xlu0 0
  %494 = vperm.xlu0 %493, %v436
  %v495 = vpop.permute.xlu0 %494
  %498 = vset.pattern.permute.xlu0 0
  %499 = vperm.xlu0 %498, %v437
  %v500 = vpop.permute.xlu0 %499
  %v502 = vmul.f32 %v285, %v465
  %v503 = vmul.f32 %v290, %v470
  %v504 = vmul.f32 %v295, %v475
  %v505 = vmul.f32 %v300, %v480
  %v506 = vmul.f32 %v305, %v485
  %v507 = vmul.f32 %v310, %v490
  %v508 = vmul.f32 %v315, %v495
  %v509 = vmul.f32 %v320, %v500
  %511 = vset.pattern.permute.xlu0 0
  %512 = vperm.xlu0 %511, %v454
  %v513 = vpop.permute.xlu0 %512
  %516 = vset.pattern.permute.xlu0 0
  %517 = vperm.xlu0 %516, %v455
  %v518 = vpop.permute.xlu0 %517
  %521 = vset.pattern.permute.xlu0 0
  %522 = vperm.xlu0 %521, %v456
  %v523 = vpop.permute.xlu0 %522
  %526 = vset.pattern.permute.xlu0 0
  %527 = vperm.xlu0 %526, %v457
  %v528 = vpop.permute.xlu0 %527
  %531 = vset.pattern.permute.xlu0 0
  %532 = vperm.xlu0 %531, %v458
  %v533 = vpop.permute.xlu0 %532
  %536 = vset.pattern.permute.xlu0 0
  %537 = vperm.xlu0 %536, %v459
  %v538 = vpop.permute.xlu0 %537
  %541 = vset.pattern.permute.xlu0 0
  %542 = vperm.xlu0 %541, %v460
  %v543 = vpop.permute.xlu0 %542
  %546 = vset.pattern.permute.xlu0 0
  %547 = vperm.xlu0 %546, %v461
  %v548 = vpop.permute.xlu0 %547
  %v550 = vadd.f32 %v502, %v513
  %v551 = vadd.f32 %v503, %v518
  %v552 = vadd.f32 %v504, %v523
  %v553 = vadd.f32 %v505, %v528
  %v554 = vadd.f32 %v506, %v533
  %v555 = vadd.f32 %v507, %v538
  %v556 = vadd.f32 %v508, %v543
  %v557 = vadd.f32 %v509, %v548
  %vm558 = vcmp.ge.f32.partialorder %v550, 0.0
  %vm559 = vcmp.ge.f32.partialorder %v551, 0.0
  %vm560 = vcmp.ge.f32.partialorder %v552, 0.0
  %vm561 = vcmp.ge.f32.partialorder %v553, 0.0
  %vm562 = vcmp.ge.f32.partialorder %v554, 0.0
  %vm563 = vcmp.ge.f32.partialorder %v555, 0.0
  %vm564 = vcmp.ge.f32.partialorder %v556, 0.0
  %vm565 = vcmp.ge.f32.partialorder %v557, 0.0
  %v566 = vmul.f32 %v550, 0.2
  %v567 = vmul.f32 %v551, 0.2
  %v568 = vmul.f32 %v552, 0.2
  %v569 = vmul.f32 %v553, 0.2
  %v570 = vmul.f32 %v554, 0.2
  %v571 = vmul.f32 %v555, 0.2
  %v572 = vmul.f32 %v556, 0.2
  %v573 = vmul.f32 %v557, 0.2
  %v574 = vsel %vm558, %v550, %v566
  %v575 = vsel %vm559, %v551, %v567
  %v576 = vsel %vm560, %v552, %v568
  %v577 = vsel %vm561, %v553, %v569
  %v578 = vsel %vm562, %v554, %v570
  %v579 = vsel %vm563, %v555, %v571
  %v580 = vsel %vm564, %v556, %v572
  %v581 = vsel %vm565, %v557, %v573
  %582 = vst [vmem:[%s4] sm:$0xff] %v574
  %583 = vst [vmem:[%s4 + $0x8] sm:$0xff] %v575
  %584 = vst [vmem:[%s4 + $0x10] sm:$0xff] %v576
  %585 = vst [vmem:[%s4 + $0x18] sm:$0xff] %v577
  %586 = vst [vmem:[%s4 + $0x20] sm:$0xff] %v578
  %587 = vst [vmem:[%s4 + $0x28] sm:$0xff] %v579
  %588 = vst [vmem:[%s4 + $0x30] sm:$0xff] %v580
  %589 = vst [vmem:[%s4 + $0x38] sm:$0xff] %v581
  // Predicated region
  $region18: #{nlayer_discriminator_forward.8} parent=0 // pred_check
    _
  $region19: #{nlayer_discriminator_forward.8} parent=0 // pred_check_branch
    %591 = sbr.rel (0) target = $region21
  $region20: #{nlayer_discriminator_forward.8} parent=0 // pred_region
    _
  $region21: #{nlayer_discriminator_forward.8} parent=0 // pred_fallthru
    _
  // Predicated region
  $region22: #{nlayer_discriminator_forward.8} parent=0 // pred_check
    _
  $region23: #{nlayer_discriminator_forward.8} parent=0 // pred_check_branch
    %593 = sbr.rel (0) target = $region25
  $region24: #{nlayer_discriminator_forward.8} parent=0 // pred_region
    _
  $region25: #{nlayer_discriminator_forward.8} parent=0 // pred_fallthru
    _

// kernel: nlayer_discriminator_forward.9
$region0: #{nlayer_discriminator_forward.9}
  #allocation0 [shape = 'u32[]', space=smem, size = 0x4, offset = 0x4, fixed_abs, tag = 'smem constant byte address 0x4 - core index']
  #allocation1 [shape = 'u32[144,128]{1,0:T(1,128)}', space=vmem, size = 0x12000, scoped, tag = 'internal scratch']
  %s0 = inlined_call_operand.vmem [shape: f32[1024,128], index: 0, kind: input, shape index: {}]
  %s1 = inlined_call_operand.vmem [shape: f32[8,1024], index: 1, kind: input, shape index: {}]
  %s2 = inlined_call_operand.vmem [shape: f32[8,1], index: 2, kind: input, shape index: {}]
  %s3 = inlined_call_operand.vmem [shape: f32[8,1], index: 3, kind: input, shape index: {}]
  %s4 = inlined_call_operand.vmem [shape: f32[8,128], index: 4, kind: output, shape index: {}]
  %s5 = sld [smem:[#allocation0]]
  $region26: #{nlayer_discriminator_forward.9} parent=0
    _
  %s7 = ssub.s32 1, %s5
  %s8 = scalar_select 0, %s7, %s5
  // Predicated region
  $region2: #{nlayer_discriminator_forward.9} parent=0 // pred_check
    _
  $region3: #{nlayer_discriminator_forward.9} parent=0 // pred_check_branch
    %10 = sbr.rel (0) target = $region5
  $region4: #{nlayer_discriminator_forward.9} parent=0 // pred_region
    _
  $region5: #{nlayer_discriminator_forward.9} parent=0 // pred_fallthru
    _
  // Predicated region
  $region6: #{nlayer_discriminator_forward.9} parent=0 // pred_check
    _
  $region7: #{nlayer_discriminator_forward.9} parent=0 // pred_check_branch
    %12 = sbr.rel (0) target = $region9
  $region8: #{nlayer_discriminator_forward.9} parent=0 // pred_region
    _
  $region9: #{nlayer_discriminator_forward.9} parent=0 // pred_fallthru
    _
  // Predicated region
  $region10: #{nlayer_discriminator_forward.9} parent=0 // pred_check
    _
  $region11: #{nlayer_discriminator_forward.9} parent=0 // pred_check_branch
    %14 = sbr.rel (0) target = $region13
  $region12: #{nlayer_discriminator_forward.9} parent=0 // pred_region
    _
  $region13: #{nlayer_discriminator_forward.9} parent=0 // pred_fallthru
    _
  // Predicated region
  $region14: #{nlayer_discriminator_forward.9} parent=0 // pred_check
    _
  $region15: #{nlayer_discriminator_forward.9} parent=0 // pred_check_branch
    %16 = sbr.rel (0) target = $region17
  $region16: #{nlayer_discriminator_forward.9} parent=0 // pred_region
    _
  $region17: #{nlayer_discriminator_forward.9} parent=0 // pred_fallthru
    _
  %v17 = vld [vmem:[%s1] sm:$0xff]
  %v18 = vld [vmem:[%s1 + $0x8] sm:$0xff]
  %v19 = vld [vmem:[%s1 + $0x10] sm:$0xff]
  %v20 = vld [vmem:[%s1 + $0x18] sm:$0xff]
  %v21 = vld [vmem:[%s1 + $0x20] sm:$0xff]
  %v22 = vld [vmem:[%s1 + $0x28] sm:$0xff]
  %v23 = vld [vmem:[%s1 + $0x30] sm:$0xff]
  %v24 = vld [vmem:[%s1 + $0x38] sm:$0xff]
  %v25 = vld [vmem:[%s0] sm:$0xff]
  %v26 = vld [vmem:[%s0 + $0x8] sm:$0xff]
  %v27 = vld [vmem:[%s0 + $0x10] sm:$0xff]
  %v28 = vld [vmem:[%s0 + $0x18] sm:$0xff]
  %v29 = vld [vmem:[%s0 + $0x20] sm:$0xff]
  %v30 = vld [vmem:[%s0 + $0x28] sm:$0xff]
  %v31 = vld [vmem:[%s0 + $0x30] sm:$0xff]
  %v32 = vld [vmem:[%s0 + $0x38] sm:$0xff]
  %v33 = vld [vmem:[%s0 + $0x40] sm:$0xff]
  %v34 = vld [vmem:[%s0 + $0x48] sm:$0xff]
  %v35 = vld [vmem:[%s0 + $0x50] sm:$0xff]
  %v36 = vld [vmem:[%s0 + $0x58] sm:$0xff]
  %v37 = vld [vmem:[%s0 + $0x60] sm:$0xff]
  %v38 = vld [vmem:[%s0 + $0x68] sm:$0xff]
  %v39 = vld [vmem:[%s0 + $0x70] sm:$0xff]
  %v40 = vld [vmem:[%s0 + $0x78] sm:$0xff]
  %v41 = vld [vmem:[%s0 + $0x80] sm:$0xff]
  %v42 = vld [vmem:[%s0 + $0x88] sm:$0xff]
  %v43 = vld [vmem:[%s0 + $0x90] sm:$0xff]
  %v44 = vld [vmem:[%s0 + $0x98] sm:$0xff]
  %v45 = vld [vmem:[%s0 + $0xa0] sm:$0xff]
  %v46 = vld [vmem:[%s0 + $0xa8] sm:$0xff]
  %v47 = vld [vmem:[%s0 + $0xb0] sm:$0xff]
  %v48 = vld [vmem:[%s0 + $0xb8] sm:$0xff]
  %v49 = vld [vmem:[%s0 + $0xc0] sm:$0xff]
  %v50 = vld [vmem:[%s0 + $0xc8] sm:$0xff]
  %v51 = vld [vmem:[%s0 + $0xd0] sm:$0xff]
  %v52 = vld [vmem:[%s0 + $0xd8] sm:$0xff]
  %v53 = vld [vmem:[%s0 + $0xe0] sm:$0xff]
  %v54 = vld [vmem:[%s0 + $0xe8] sm:$0xff]
  %v55 = vld [vmem:[%s0 + $0xf0] sm:$0xff]
  %v56 = vld [vmem:[%s0 + $0xf8] sm:$0xff]
  %v57 = vld [vmem:[%s0 + $0x100] sm:$0xff]
  %v58 = vld [vmem:[%s0 + $0x108] sm:$0xff]
  %v59 = vld [vmem:[%s0 + $0x110] sm:$0xff]
  %v60 = vld [vmem:[%s0 + $0x118] sm:$0xff]
  %v61 = vld [vmem:[%s0 + $0x120] sm:$0xff]
  %v62 = vld [vmem:[%s0 + $0x128] sm:$0xff]
  %v63 = vld [vmem:[%s0 + $0x130] sm:$0xff]
  %v64 = vld [vmem:[%s0 + $0x138] sm:$0xff]
  %v65 = vld [vmem:[%s0 + $0x140] sm:$0xff]
  %v66 = vld [vmem:[%s0 + $0x148] sm:$0xff]
  %v67 = vld [vmem:[%s0 + $0x150] sm:$0xff]
  %v68 = vld [vmem:[%s0 + $0x158] sm:$0xff]
  %v69 = vld [vmem:[%s0 + $0x160] sm:$0xff]
  %v70 = vld [vmem:[%s0 + $0x168] sm:$0xff]
  %v71 = vld [vmem:[%s0 + $0x170] sm:$0xff]
  %v72 = vld [vmem:[%s0 + $0x178] sm:$0xff]
  %v73 = vld [vmem:[%s0 + $0x180] sm:$0xff]
  %v74 = vld [vmem:[%s0 + $0x188] sm:$0xff]
  %v75 = vld [vmem:[%s0 + $0x190] sm:$0xff]
  %v76 = vld [vmem:[%s0 + $0x198] sm:$0xff]
  %v77 = vld [vmem:[%s0 + $0x1a0] sm:$0xff]
  %v78 = vld [vmem:[%s0 + $0x1a8] sm:$0xff]
  %v79 = vld [vmem:[%s0 + $0x1b0] sm:$0xff]
  %v80 = vld [vmem:[%s0 + $0x1b8] sm:$0xff]
  %v81 = vld [vmem:[%s0 + $0x1c0] sm:$0xff]
  %v82 = vld [vmem:[%s0 + $0x1c8] sm:$0xff]
  %v83 = vld [vmem:[%s0 + $0x1d0] sm:$0xff]
  %v84 = vld [vmem:[%s0 + $0x1d8] sm:$0xff]
  %v85 = vld [vmem:[%s0 + $0x1e0] sm:$0xff]
  %v86 = vld [vmem:[%s0 + $0x1e8] sm:$0xff]
  %v87 = vld [vmem:[%s0 + $0x1f0] sm:$0xff]
  %v88 = vld [vmem:[%s0 + $0x1f8] sm:$0xff]
  %v89 = vld [vmem:[%s0 + $0x200] sm:$0xff]
  %v90 = vld [vmem:[%s0 + $0x208] sm:$0xff]
  %v91 = vld [vmem:[%s0 + $0x210] sm:$0xff]
  %v92 = vld [vmem:[%s0 + $0x218] sm:$0xff]
  %v93 = vld [vmem:[%s0 + $0x220] sm:$0xff]
  %v94 = vld [vmem:[%s0 + $0x228] sm:$0xff]
  %v95 = vld [vmem:[%s0 + $0x230] sm:$0xff]
  %v96 = vld [vmem:[%s0 + $0x238] sm:$0xff]
  %v97 = vld [vmem:[%s0 + $0x240] sm:$0xff]
  %v98 = vld [vmem:[%s0 + $0x248] sm:$0xff]
  %v99 = vld [vmem:[%s0 + $0x250] sm:$0xff]
  %v100 = vld [vmem:[%s0 + $0x258] sm:$0xff]
  %v101 = vld [vmem:[%s0 + $0x260] sm:$0xff]
  %v102 = vld [vmem:[%s0 + $0x268] sm:$0xff]
  %v103 = vld [vmem:[%s0 + $0x270] sm:$0xff]
  %v104 = vld [vmem:[%s0 + $0x278] sm:$0xff]
  %v105 = vld [vmem:[%s0 + $0x280] sm:$0xff]
  %v106 = vld [vmem:[%s0 + $0x288] sm:$0xff]
  %v107 = vld [vmem:[%s0 + $0x290] sm:$0xff]
  %v108 = vld [vmem:[%s0 + $0x298] sm:$0xff]
  %v109 = vld [vmem:[%s0 + $0x2a0] sm:$0xff]
  %v110 = vld [vmem:[%s0 + $0x2a8] sm:$0xff]
  %v111 = vld [vmem:[%s0 + $0x2b0] sm:$0xff]
  %v112 = vld [vmem:[%s0 + $0x2b8] sm:$0xff]
  %v113 = vld [vmem:[%s0 + $0x2c0] sm:$0xff]
  %v114 = vld [vmem:[%s0 + $0x2c8] sm:$0xff]
  %v115 = vld [vmem:[%s0 + $0x2d0] sm:$0xff]
  %v116 = vld [vmem:[%s0 + $0x2d8] sm:$0xff]
  %v117 = vld [vmem:[%s0 + $0x2e0] sm:$0xff]
  %v118 = vld [vmem:[%s0 + $0x2e8] sm:$0xff]
  %v119 = vld [vmem:[%s0 + $0x2f0] sm:$0xff]
  %v120 = vld [vmem:[%s0 + $0x2f8] sm:$0xff]
  %v121 = vld [vmem:[%s0 + $0x300] sm:$0xff]
  %v122 = vld [vmem:[%s0 + $0x308] sm:$0xff]
  %v123 = vld [vmem:[%s0 + $0x310] sm:$0xff]
  %v124 = vld [vmem:[%s0 + $0x318] sm:$0xff]
  %v125 = vld [vmem:[%s0 + $0x320] sm:$0xff]
  %v126 = vld [vmem:[%s0 + $0x328] sm:$0xff]
  %v127 = vld [vmem:[%s0 + $0x330] sm:$0xff]
  %v128 = vld [vmem:[%s0 + $0x338] sm:$0xff]
  %v129 = vld [vmem:[%s0 + $0x340] sm:$0xff]
  %v130 = vld [vmem:[%s0 + $0x348] sm:$0xff]
  %v131 = vld [vmem:[%s0 + $0x350] sm:$0xff]
  %v132 = vld [vmem:[%s0 + $0x358] sm:$0xff]
  %v133 = vld [vmem:[%s0 + $0x360] sm:$0xff]
  %v134 = vld [vmem:[%s0 + $0x368] sm:$0xff]
  %v135 = vld [vmem:[%s0 + $0x370] sm:$0xff]
  %v136 = vld [vmem:[%s0 + $0x378] sm:$0xff]
  %v137 = vld [vmem:[%s0 + $0x380] sm:$0xff]
  %v138 = vld [vmem:[%s0 + $0x388] sm:$0xff]
  %v139 = vld [vmem:[%s0 + $0x390] sm:$0xff]
  %v140 = vld [vmem:[%s0 + $0x398] sm:$0xff]
  %v141 = vld [vmem:[%s0 + $0x3a0] sm:$0xff]
  %v142 = vld [vmem:[%s0 + $0x3a8] sm:$0xff]
  %v143 = vld [vmem:[%s0 + $0x3b0] sm:$0xff]
  %v144 = vld [vmem:[%s0 + $0x3b8] sm:$0xff]
  %v145 = vld [vmem:[%s0 + $0x3c0] sm:$0xff]
  %v146 = vld [vmem:[%s0 + $0x3c8] sm:$0xff]
  %v147 = vld [vmem:[%s0 + $0x3d0] sm:$0xff]
  %v148 = vld [vmem:[%s0 + $0x3d8] sm:$0xff]
  %v149 = vld [vmem:[%s0 + $0x3e0] sm:$0xff]
  %v150 = vld [vmem:[%s0 + $0x3e8] sm:$0xff]
  %v151 = vld [vmem:[%s0 + $0x3f0] sm:$0xff]
  %v152 = vld [vmem:[%s0 + $0x3f8] sm:$0xff]
  %v153 = vld [vmem:[%s3] sm:$0xff]
  %155 = vset.pattern.permute.xlu0 0
  %156 = vperm.xlu0 %155, %v153
  %v157 = vpop.permute.xlu0 %156
  %159 = vmatprep.subr.mxu0 0.0
  %160 = vmatpush1.msra.mxu0 %v25
  %161 = vmatprep.subr.mxu0 0.0
  %162 = vmatpush1.msra.mxu0 %v26
  %163 = vmatprep.subr.mxu0 0.0
  %164 = vmatpush1.msra.mxu0 %v27
  %165 = vmatprep.subr.mxu0 0.0
  %166 = vmatpush1.msra.mxu0 %v28
  %167 = vmatprep.subr.mxu0 0.0
  %168 = vmatpush1.msra.mxu0 %v29
  %169 = vmatprep.subr.mxu0 0.0
  %170 = vmatpush1.msra.mxu0 %v30
  %171 = vmatprep.subr.mxu0 0.0
  %172 = vmatpush1.msra.mxu0 %v31
  %173 = vmatprep.subr.mxu0 0.0
  %174 = vmatpush1.msra.mxu0 %v32
  %175 = vmatprep.subr.mxu0 0.0
  %176 = vmatpush1.msra.mxu0 %v33
  %177 = vmatprep.subr.mxu0 0.0
  %178 = vmatpush1.msra.mxu0 %v34
  %179 = vmatprep.subr.mxu0 0.0
  %180 = vmatpush1.msra.mxu0 %v35
  %181 = vmatprep.subr.mxu0 0.0
  %182 = vmatpush1.msra.mxu0 %v36
  %183 = vmatprep.subr.mxu0 0.0
  %184 = vmatpush1.msra.mxu0 %v37
  %185 = vmatprep.subr.mxu0 0.0
  %186 = vmatpush1.msra.mxu0 %v38
  %187 = vmatprep.subr.mxu0 0.0
  %188 = vmatpush1.msra.mxu0 %v39
  %189 = vmatprep.subr.mxu0 0.0
  %190 = vmatpush1.msra.mxu0 %v40
  %191 = vmatprep.subr.mxu0 0.0
  %192 = vmatpush1.msra.mxu0 %v41
  %193 = vmatprep.subr.mxu0 0.0
  %194 = vmatpush1.msra.mxu0 %v42
  %195 = vmatprep.subr.mxu0 0.0
  %196 = vmatpush1.msra.mxu0 %v43
  %197 = vmatprep.subr.mxu0 0.0
  %198 = vmatpush1.msra.mxu0 %v44
  %199 = vmatprep.subr.mxu0 0.0
  %200 = vmatpush1.msra.mxu0 %v45
  %201 = vmatprep.subr.mxu0 0.0
  %202 = vmatpush1.msra.mxu0 %v46
  %203 = vmatprep.subr.mxu0 0.0
  %204 = vmatpush1.msra.mxu0 %v47
  %205 = vmatprep.subr.mxu0 0.0
  %206 = vmatpush1.msra.mxu0 %v48
  %207 = vmatprep.subr.mxu0 0.0
  %208 = vmatpush1.msra.mxu0 %v49
  %209 = vmatprep.subr.mxu0 0.0
  %210 = vmatpush1.msra.mxu0 %v50
  %211 = vmatprep.subr.mxu0 0.0
  %212 = vmatpush1.msra.mxu0 %v51
  %213 = vmatprep.subr.mxu0 0.0
  %214 = vmatpush1.msra.mxu0 %v52
  %215 = vmatprep.subr.mxu0 0.0
  %216 = vmatpush1.msra.mxu0 %v53
  %217 = vmatprep.subr.mxu0 0.0
  %218 = vmatpush1.msra.mxu0 %v54
  %219 = vmatprep.subr.mxu0 0.0
  %220 = vmatpush1.msra.mxu0 %v55
  %221 = vmatprep.subr.mxu0 0.0
  %222 = vmatpush1.msra.mxu0 %v56
  %223 = vmatprep.mubr.f32.mxu0 %v18
  %224 = vmatmul.mubr.f32.gmra.mrb[0].mxu0 %v17
  %v225 = vpop.f32.mrb[0].mxu0
  %v226 = vadd.f32 %v157, %v225
  %v227 = vpop.f32.mrb[0].mxu0
  %228 = vdwg.mxu0
  %229 = vmatprep.subr.mxu0 0.0
  %230 = vmatpush1.msra.mxu0 %v57
  %231 = vmatprep.subr.mxu0 0.0
  %232 = vmatpush1.msra.mxu0 %v58
  %233 = vmatprep.subr.mxu0 0.0
  %234 = vmatpush1.msra.mxu0 %v59
  %235 = vmatprep.subr.mxu0 0.0
  %236 = vmatpush1.msra.mxu0 %v60
  %237 = vmatprep.subr.mxu0 0.0
  %238 = vmatpush1.msra.mxu0 %v61
  %239 = vmatprep.subr.mxu0 0.0
  %240 = vmatpush1.msra.mxu0 %v62
  %241 = vmatprep.subr.mxu0 0.0
  %242 = vmatpush1.msra.mxu0 %v63
  %243 = vmatprep.subr.mxu0 0.0
  %244 = vmatpush1.msra.mxu0 %v64
  %245 = vmatprep.subr.mxu0 0.0
  %246 = vmatpush1.msra.mxu0 %v65
  %247 = vmatprep.subr.mxu0 0.0
  %248 = vmatpush1.msra.mxu0 %v66
  %249 = vmatprep.subr.mxu0 0.0
  %250 = vmatpush1.msra.mxu0 %v67
  %251 = vmatprep.subr.mxu0 0.0
  %252 = vmatpush1.msra.mxu0 %v68
  %253 = vmatprep.subr.mxu0 0.0
  %254 = vmatpush1.msra.mxu0 %v69
  %255 = vmatprep.subr.mxu0 0.0
  %256 = vmatpush1.msra.mxu0 %v70
  %257 = vmatprep.subr.mxu0 0.0
  %258 = vmatpush1.msra.mxu0 %v71
  %259 = vmatprep.subr.mxu0 0.0
  %260 = vmatpush1.msra.mxu0 %v72
  %261 = vmatprep.subr.mxu0 0.0
  %262 = vmatpush1.msra.mxu0 %v73
  %263 = vmatprep.subr.mxu0 0.0
  %264 = vmatpush1.msra.mxu0 %v74
  %265 = vmatprep.subr.mxu0 0.0
  %266 = vmatpush1.msra.mxu0 %v75
  %267 = vmatprep.subr.mxu0 0.0
  %268 = vmatpush1.msra.mxu0 %v76
  %269 = vmatprep.subr.mxu0 0.0
  %270 = vmatpush1.msra.mxu0 %v77
  %271 = vmatprep.subr.mxu0 0.0
  %272 = vmatpush1.msra.mxu0 %v78
  %273 = vmatprep.subr.mxu0 0.0
  %274 = vmatpush1.msra.mxu0 %v79
  %275 = vmatprep.subr.mxu0 0.0
  %276 = vmatpush1.msra.mxu0 %v80
  %277 = vmatprep.subr.mxu0 0.0
  %278 = vmatpush1.msra.mxu0 %v81
  %279 = vmatprep.subr.mxu0 0.0
  %280 = vmatpush1.msra.mxu0 %v82
  %281 = vmatprep.subr.mxu0 0.0
  %282 = vmatpush1.msra.mxu0 %v83
  %283 = vmatprep.subr.mxu0 0.0
  %284 = vmatpush1.msra.mxu0 %v84
  %285 = vmatprep.subr.mxu0 0.0
  %286 = vmatpush1.msra.mxu0 %v85
  %287 = vmatprep.subr.mxu0 0.0
  %288 = vmatpush1.msra.mxu0 %v86
  %289 = vmatprep.subr.mxu0 0.0
  %290 = vmatpush1.msra.mxu0 %v87
  %291 = vmatprep.subr.mxu0 0.0
  %292 = vmatpush1.msra.mxu0 %v88
  %293 = vmatprep.mubr.f32.mxu0 %v20
  %294 = vmatmul.mubr.f32.gmra.mrb[0].mxu0 %v19
  %v295 = vpop.f32.mrb[0].mxu0
  %v296 = vadd.f32 %v226, %v295
  %v297 = vpop.f32.mrb[0].mxu0
  %298 = vdwg.mxu0
  %299 = vmatprep.subr.mxu0 0.0
  %300 = vmatpush1.msra.mxu0 %v89
  %301 = vmatprep.subr.mxu0 0.0
  %302 = vmatpush1.msra.mxu0 %v90
  %303 = vmatprep.subr.mxu0 0.0
  %304 = vmatpush1.msra.mxu0 %v91
  %305 = vmatprep.subr.mxu0 0.0
  %306 = vmatpush1.msra.mxu0 %v92
  %307 = vmatprep.subr.mxu0 0.0
  %308 = vmatpush1.msra.mxu0 %v93
  %309 = vmatprep.subr.mxu0 0.0
  %310 = vmatpush1.msra.mxu0 %v94
  %311 = vmatprep.subr.mxu0 0.0
  %312 = vmatpush1.msra.mxu0 %v95
  %313 = vmatprep.subr.mxu0 0.0
  %314 = vmatpush1.msra.mxu0 %v96
  %315 = vmatprep.subr.mxu0 0.0
  %316 = vmatpush1.msra.mxu0 %v97
  %317 = vmatprep.subr.mxu0 0.0
  %318 = vmatpush1.msra.mxu0 %v98
  %319 = vmatprep.subr.mxu0 0.0
  %320 = vmatpush1.msra.mxu0 %v99
  %321 = vmatprep.subr.mxu0 0.0
  %322 = vmatpush1.msra.mxu0 %v100
  %323 = vmatprep.subr.mxu0 0.0
  %324 = vmatpush1.msra.mxu0 %v101
  %325 = vmatprep.subr.mxu0 0.0
  %326 = vmatpush1.msra.mxu0 %v102
  %327 = vmatprep.subr.mxu0 0.0
  %328 = vmatpush1.msra.mxu0 %v103
  %329 = vmatprep.subr.mxu0 0.0
  %330 = vmatpush1.msra.mxu0 %v104
  %331 = vmatprep.subr.mxu0 0.0
  %332 = vmatpush1.msra.mxu0 %v105
  %333 = vmatprep.subr.mxu0 0.0
  %334 = vmatpush1.msra.mxu0 %v106
  %335 = vmatprep.subr.mxu0 0.0
  %336 = vmatpush1.msra.mxu0 %v107
  %337 = vmatprep.subr.mxu0 0.0
  %338 = vmatpush1.msra.mxu0 %v108
  %339 = vmatprep.subr.mxu0 0.0
  %340 = vmatpush1.msra.mxu0 %v109
  %341 = vmatprep.subr.mxu0 0.0
  %342 = vmatpush1.msra.mxu0 %v110
  %343 = vmatprep.subr.mxu0 0.0
  %344 = vmatpush1.msra.mxu0 %v111
  %345 = vmatprep.subr.mxu0 0.0
  %346 = vmatpush1.msra.mxu0 %v112
  %347 = vmatprep.subr.mxu0 0.0
  %348 = vmatpush1.msra.mxu0 %v113
  %349 = vmatprep.subr.mxu0 0.0
  %350 = vmatpush1.msra.mxu0 %v114
  %351 = vmatprep.subr.mxu0 0.0
  %352 = vmatpush1.msra.mxu0 %v115
  %353 = vmatprep.subr.mxu0 0.0
  %354 = vmatpush1.msra.mxu0 %v116
  %355 = vmatprep.subr.mxu0 0.0
  %356 = vmatpush1.msra.mxu0 %v117
  %357 = vmatprep.subr.mxu0 0.0
  %358 = vmatpush1.msra.mxu0 %v118
  %359 = vmatprep.subr.mxu0 0.0
  %360 = vmatpush1.msra.mxu0 %v119
  %361 = vmatprep.subr.mxu0 0.0
  %362 = vmatpush1.msra.mxu0 %v120
  %363 = vmatprep.mubr.f32.mxu0 %v22
  %364 = vmatmul.mubr.f32.gmra.mrb[0].mxu0 %v21
  %v365 = vpop.f32.mrb[0].mxu0
  %v366 = vadd.f32 %v296, %v365
  %v367 = vpop.f32.mrb[0].mxu0
  %368 = vdwg.mxu0
  %369 = vmatprep.subr.mxu0 0.0
  %370 = vmatpush1.msra.mxu0 %v121
  %371 = vmatprep.subr.mxu0 0.0
  %372 = vmatpush1.msra.mxu0 %v122
  %373 = vmatprep.subr.mxu0 0.0
  %374 = vmatpush1.msra.mxu0 %v123
  %375 = vmatprep.subr.mxu0 0.0
  %376 = vmatpush1.msra.mxu0 %v124
  %377 = vmatprep.subr.mxu0 0.0
  %378 = vmatpush1.msra.mxu0 %v125
  %379 = vmatprep.subr.mxu0 0.0
  %380 = vmatpush1.msra.mxu0 %v126
  %381 = vmatprep.subr.mxu0 0.0
  %382 = vmatpush1.msra.mxu0 %v127
  %383 = vmatprep.subr.mxu0 0.0
  %384 = vmatpush1.msra.mxu0 %v128
  %385 = vmatprep.subr.mxu0 0.0
  %386 = vmatpush1.msra.mxu0 %v129
  %387 = vmatprep.subr.mxu0 0.0
  %388 = vmatpush1.msra.mxu0 %v130
  %389 = vmatprep.subr.mxu0 0.0
  %390 = vmatpush1.msra.mxu0 %v131
  %391 = vmatprep.subr.mxu0 0.0
  %392 = vmatpush1.msra.mxu0 %v132
  %393 = vmatprep.subr.mxu0 0.0
  %394 = vmatpush1.msra.mxu0 %v133
  %395 = vmatprep.subr.mxu0 0.0
  %396 = vmatpush1.msra.mxu0 %v134
  %397 = vmatprep.subr.mxu0 0.0
  %398 = vmatpush1.msra.mxu0 %v135
  %399 = vmatprep.subr.mxu0 0.0
  %400 = vmatpush1.msra.mxu0 %v136
  %401 = vmatprep.subr.mxu0 0.0
  %402 = vmatpush1.msra.mxu0 %v137
  %403 = vmatprep.subr.mxu0 0.0
  %404 = vmatpush1.msra.mxu0 %v138
  %405 = vmatprep.subr.mxu0 0.0
  %406 = vmatpush1.msra.mxu0 %v139
  %407 = vmatprep.subr.mxu0 0.0
  %408 = vmatpush1.msra.mxu0 %v140
  %409 = vmatprep.subr.mxu0 0.0
  %410 = vmatpush1.msra.mxu0 %v141
  %411 = vmatprep.subr.mxu0 0.0
  %412 = vmatpush1.msra.mxu0 %v142
  %413 = vmatprep.subr.mxu0 0.0
  %414 = vmatpush1.msra.mxu0 %v143
  %415 = vmatprep.subr.mxu0 0.0
  %416 = vmatpush1.msra.mxu0 %v144
  %417 = vmatprep.subr.mxu0 0.0
  %418 = vmatpush1.msra.mxu0 %v145
  %419 = vmatprep.subr.mxu0 0.0
  %420 = vmatpush1.msra.mxu0 %v146
  %421 = vmatprep.subr.mxu0 0.0
  %422 = vmatpush1.msra.mxu0 %v147
  %423 = vmatprep.subr.mxu0 0.0
  %424 = vmatpush1.msra.mxu0 %v148
  %425 = vmatprep.subr.mxu0 0.0
  %426 = vmatpush1.msra.mxu0 %v149
  %427 = vmatprep.subr.mxu0 0.0
  %428 = vmatpush1.msra.mxu0 %v150
  %429 = vmatprep.subr.mxu0 0.0
  %430 = vmatpush1.msra.mxu0 %v151
  %431 = vmatprep.subr.mxu0 0.0
  %432 = vmatpush1.msra.mxu0 %v152
  %433 = vmatprep.mubr.f32.mxu0 %v24
  %434 = vmatmul.mubr.f32.gmra.mrb[0].mxu0 %v23
  %v435 = vpop.f32.mrb[0].mxu0
  %v436 = vadd.f32 %v366, %v435
  %v437 = vpop.f32.mrb[0].mxu0
  %438 = vdwg.mxu0
  %439 = vst [vmem:[%s4] sm:$0xff] %v436
  // Predicated region
  $region18: #{nlayer_discriminator_forward.9} parent=0 // pred_check
    _
  $region19: #{nlayer_discriminator_forward.9} parent=0 // pred_check_branch
    %441 = sbr.rel (0) target = $region21
  $region20: #{nlayer_discriminator_forward.9} parent=0 // pred_region
    _
  $region21: #{nlayer_discriminator_forward.9} parent=0 // pred_fallthru
    _
  // Predicated region
  $region22: #{nlayer_discriminator_forward.9} parent=0 // pred_check
    _
  $region23: #{nlayer_discriminator_forward.9} parent=0 // pred_check_branch
    %443 = sbr.rel (0) target = $region25
  $region24: #{nlayer_discriminator_forward.9} parent=0 // pred_region
    _
  $region25: #{nlayer_discriminator_forward.9} parent=0 // pred_fallthru
    _

</llo_original>
